<compile_context>
chip_gen: v5e
topology: v5e:2x2
jax: 0.10.0
libtpu: 0.0.40
codegen_flags: <defaults>
</compile_context>

<pallas_src>
import jax
import jax.numpy as jnp
from jax.experimental import pallas as pl
from jax.experimental.pallas import tpu as pltpu

NUM_HEADS = 8
LN_EPS = 1e-5
LANE = 128
_VMEM_LIMIT_BYTES = 48 * 1024 * 1024   # > 16/32 MiB scoped defaults, < 64 MiB v7x physical
_ROW_TILE_BUDGET_BYTES = 8 << 20       # activation budget per MLP row tile


def _round_up(n, m):
    return ((n + m - 1) // m) * m


def _const_spec(p, single_buffer):
    """Full-array block, constant index_map -> weight stays resident in VMEM."""
    nd = p.ndim

    def imap(*_):
        return (0,) * nd

    if single_buffer:
        # Constant blocks never change -> no need for double buffering.
        return pl.BlockSpec(p.shape, imap, pipeline_mode=pl.Buffered(1))
    return pl.BlockSpec(p.shape, imap)


def _call_single_buffered(build):
    """Prefer single-buffered resident weights; fall back to default pipelining if
    this Pallas build rejects Buffered(1)."""
    try:
        return build(True)
    except Exception:
        return build(False)


# ----------------------------------------------------------------------------
# Kernel 1: 3-layer MLP (compress / expand branches), row-tiled over M
# ----------------------------------------------------------------------------
def _mlp3_kernel(x_ref, w1_ref, b1_ref, w2_ref, b2_ref, w3_ref, b3_ref, o_ref):
    # One (tm, Dp) lane-dense row tile; weights bf16-resident, f32 MXU accumulate.
    # NOTE: rows of a partial last tile are Pallas read-padding (garbage) — safe
    # because nothing reduces across the row axis here and writeback is masked.
    x = x_ref[...].astype(jnp.bfloat16)
    h = jnp.dot(x, w1_ref[...], preferred_element_type=jnp.float32) + b1_ref[...]
    h = jnp.maximum(h, 0.0).astype(jnp.bfloat16)
    h = jnp.dot(h, w2_ref[...], preferred_element_type=jnp.float32) + b2_ref[...]
    h = jnp.maximum(h, 0.0).astype(jnp.bfloat16)
    o = jnp.dot(h, w3_ref[...], preferred_element_type=jnp.float32) + b3_ref[...]
    o_ref[...] = o.astype(o_ref.dtype)


def _choose_row_tile(m, padded_dims):
    """Row tile as large as the activation budget allows (amortises the ~0.35us
    per-step overhead) but kept to >=2 grid steps when possible so v7x's second
    TensorCore is used.  Do NOT shrink below that on v5e — raise the VMEM limit."""
    if m <= 8:
        return m
    bytes_per_row = 4 * sum(padded_dims) * 2        # f32 acts, double-buffered in/out
    tm = min(m, max(8, _ROW_TILE_BUDGET_BYTES // bytes_per_row))
    tm = max(8, (tm // 8) * 8)
    if tm >= m:                                     # whole problem in one tile -> split in 2
        tm = max(8, (((m + 1) // 2 + 7) // 8) * 8)
    return tm


def _pad_mlp_params(params):
    out = []
    for i in range(3):
        w, b = params[2 * i], params[2 * i + 1]
        din, dout = w.shape
        dinp, doutp = _round_up(din, LANE), _round_up(dout, LANE)
        wp = jnp.pad(w.astype(jnp.bfloat16), ((0, dinp - din), (0, doutp - dout)))
        bp = jnp.pad(b, (0, doutp - dout)).reshape(1, doutp)
        out += [wp, bp]
    return tuple(out)


def mlp3(x2d, params):
    m, d = x2d.shape
    padded = _pad_mlp_params(params)
    d_in_p = padded[0].shape[0]
    d_out = params[4].shape[1]
    d_out_p = padded[4].shape[1]
    xp = x2d if d_in_p == d else jnp.pad(x2d, ((0, 0), (0, d_in_p - d)))
    padded_dims = (padded[0].shape[0], padded[0].shape[1],
                   padded[2].shape[1], padded[4].shape[1])
    tm = _choose_row_tile(m, padded_dims)
    grid = (pl.cdiv(m, tm),)

    def build(single_buffer):
        in_specs = [pl.BlockSpec((tm, d_in_p), lambda i: (i, 0))]
        in_specs += [_const_spec(p, single_buffer) for p in padded]
        return pl.pallas_call(
            _mlp3_kernel,
            out_shape=jax.ShapeDtypeStruct((m, d_out_p), x2d.dtype),
            grid=grid,
            in_specs=in_specs,
            out_specs=pl.BlockSpec((tm, d_out_p), lambda i: (i, 0)),
            compiler_params=pltpu.CompilerParams(
                dimension_semantics=("parallel",),
                vmem_limit_bytes=_VMEM_LIMIT_BYTES),
        )(xp, *padded)

    out = _call_single_buffered(build)
    return out[:, :d_out]


# ----------------------------------------------------------------------------
# Kernel 2: MultiheadAttention + residual + LayerNorm + FFN, gridded over batch
# ----------------------------------------------------------------------------
def _make_attn_kernel(e_real, num_heads):
    hd = e_real // num_heads
    scale = float(hd) ** -0.5
    inv_e = 1.0 / float(e_real)

    def kernel(x_ref, wq_ref, bq_ref, wk_ref, bk_ref, wv_ref, bv_ref,
               wo_ref, bo_ref, g_ref, beta_ref, w1_ref, b1_ref, w2_ref, b2_ref,
               o_ref):
        x = x_ref[0]                                  # (L, E_pad) f32, pad lanes == 0
        L, e_pad = x.shape
        xb = x.astype(jnp.bfloat16)

        # Per-head attention from resident per-head weight tiles.  Static unroll:
        # only 2-D matmuls / elementwise / lane reductions — no reshapes, no
        # head-major transposes, no concat (Wo contributions are summed).
        attended = jnp.zeros((L, e_pad), jnp.float32)
        for h in range(num_heads):
            q = jnp.dot(xb, wq_ref[h], preferred_element_type=jnp.float32) + bq_ref[h]
            k = jnp.dot(xb, wk_ref[h], preferred_element_type=jnp.float32) + bk_ref[h]
            v = jnp.dot(xb, wv_ref[h], preferred_element_type=jnp.float32) + bv_ref[h]
            s = jnp.einsum('ld,md->lm', q.astype(jnp.bfloat16), k.astype(jnp.bfloat16),
                           preferred_element_type=jnp.float32) * scale
            s = s - jnp.max(s, axis=-1, keepdims=True)
            p = jnp.exp(s)
            p = p / jnp.sum(p, axis=-1, keepdims=True)        # exact softmax
            ctx = jnp.dot(p.astype(jnp.bfloat16), v.astype(jnp.bfloat16),
                          preferred_element_type=jnp.float32)
            attended = attended + jnp.dot(ctx.astype(jnp.bfloat16), wo_ref[h],
                                          preferred_element_type=jnp.float32)
        attended = attended + bo_ref[...]

        # residual + LayerNorm(eps=1e-5) in f32, statistics over the REAL E lanes
        # only (padded lanes of y are exactly zero by construction).
        y = x + attended
        mean = jnp.sum(y, axis=-1, keepdims=True) * inv_e
        lane = jax.lax.broadcasted_iota(jnp.int32, y.shape, 1)
        yc = jnp.where(lane < e_real, y - mean, 0.0)
        var = jnp.sum(yc * yc, axis=-1, keepdims=True) * inv_e
        yn = yc * jax.lax.rsqrt(var + LN_EPS) * g_ref[...] + beta_ref[...]

        # feed-forward: Linear(E, 4E) -> ReLU -> Linear(4E, E), lane-dense
        h1 = jnp.dot(yn.astype(jnp.bfloat16), w1_ref[...],
                     preferred_element_type=jnp.float32) + b1_ref[...]
        h1 = jnp.maximum(h1, 0.0).astype(jnp.bfloat16)
        out = jnp.dot(h1, w2_ref[...], preferred_element_type=jnp.float32) + b2_ref[...]
        o_ref[...] = out[None].astype(o_ref.dtype)

    return kernel


def _pad_attn_params(params, num_heads):
    (wq, bq, wk, bk, wv, bv, wo, bo, gamma, beta, w1, b1, w2, b2) = params
    e = wq.shape[0]
    h_ = num_heads
    hd = e // h_
    hd_p = _round_up(hd, 8)
    e_pad = _round_up(e, LANE)
    f = w1.shape[1]
    f_pad = _round_up(f, LANE)
    bf = jnp.bfloat16

    def qkv_w(w):      # (E, E) -> (H, E_pad, hd_p): per-head column blocks
        w3 = jnp.transpose(w.astype(bf).reshape(e, h_, hd), (1, 0, 2))
        return jnp.pad(w3, ((0, 0), (0, e_pad - e), (0, hd_p - hd)))

    def qkv_b(b):      # (E,) -> (H, 1, hd_p), f32
        return jnp.pad(b.reshape(h_, 1, hd), ((0, 0), (0, 0), (0, hd_p - hd)))

    def o_w(w):        # (E, E) -> (H, hd_p, E_pad): per-head row blocks
        w3 = w.astype(bf).reshape(h_, hd, e)
        return jnp.pad(w3, ((0, 0), (0, hd_p - hd), (0, e_pad - e)))

    def vec(v, n):     # (len,) -> (1, n), zero-padded f32
        return jnp.pad(v, (0, n - v.shape[0])).reshape(1, n)

    def mat(w, r, c):  # zero-padded bf16
        return jnp.pad(w.astype(bf), ((0, r - w.shape[0]), (0, c - w.shape[1])))

    return (qkv_w(wq), qkv_b(bq), qkv_w(wk), qkv_b(bk), qkv_w(wv), qkv_b(bv),
            o_w(wo), vec(bo, e_pad), vec(gamma, e_pad), vec(beta, e_pad),
            mat(w1, e_pad, f_pad), vec(b1, f_pad),
            mat(w2, f_pad, e_pad), vec(b2, e_pad))


def attn_block(x_lne, params, num_heads=NUM_HEADS):
    L, n, e = x_lne.shape
    assert e % num_heads == 0, "embed dim must be divisible by num_heads"
    padded = _pad_attn_params(params, num_heads)
    e_pad = padded[8].shape[1]
    # (L, N, E) -> (N, L, E_pad): one tiny fused pad+transpose in the wrapper.
    # Batch-first keeps the per-step block (1, L, E_pad) sublane/lane legal and the
    # batch grid "parallel" (>= 2 steps -> both v7x TensorCores busy).
    xb = jnp.pad(jnp.transpose(x_lne, (1, 0, 2)), ((0, 0), (0, 0), (0, e_pad - e)))
    kernel = _make_attn_kernel(e, num_heads)

    def build(single_buffer):
        in_specs = [pl.BlockSpec((1, L, e_pad), lambda b: (b, 0, 0))]
        in_specs += [_const_spec(p, single_buffer) for p in padded]
        return pl.pallas_call(
            kernel,
            out_shape=jax.ShapeDtypeStruct((n, L, e_pad), x_lne.dtype),
            grid=(n,),
            in_specs=in_specs,
            out_specs=pl.BlockSpec((1, L, e_pad), lambda b: (b, 0, 0)),
            compiler_params=pltpu.CompilerParams(
                dimension_semantics=("parallel",),
                vmem_limit_bytes=_VMEM_LIMIT_BYTES),
        )(xb, *padded)

    out = _call_single_buffered(build)
    return jnp.transpose(out[..., :e], (1, 0, 2))     # back to (L, N, E)


# ----------------------------------------------------------------------------
# MemoryTransformer forward
# ----------------------------------------------------------------------------
def memory_transformer_forward(x, params, operation, num_heads=NUM_HEADS):
    if operation in ('compress', 'expand'):
        d_out = params[4].shape[1]
        lead = x.shape[:-1]
        out = mlp3(x.reshape(-1, x.shape[-1]), params)
        return out.reshape(*lead, d_out)
    # attention branch: torch nn.MultiheadAttention default layout (L, N, E)
    return attn_block(x, params, num_heads)


# ----------------------------------------------------------------------------
# Deterministic parameter construction (REAL, unpadded, f32; weights (in, out))
# ----------------------------------------------------------------------------
def init_mlp_params(key, dims):
    params = []
    for i in range(3):
        key, kw, kb = jax.random.split(key, 3)
        w = 0.1 * jax.random.normal(kw, (dims[i], dims[i + 1]), jnp.float32)
        b = 0.1 * jax.random.normal(kb, (dims[i + 1],), jnp.float32)
        params += [w, b]
    return tuple(params)


def init_attn_params(key, dim):
    ks = jax.random.split(key, 12)

    def w(k, shape):
        return 0.1 * jax.random.normal(k, shape, jnp.float32)

    def b(k, n):
        return 0.1 * jax.random.normal(k, (n,), jnp.float32)

    wq, bq = w(ks[0], (dim, dim)), b(ks[1], dim)
    wk, bk = w(ks[2], (dim, dim)), b(ks[3], dim)
    wv, bv = w(ks[4], (dim, dim)), b(ks[5], dim)
    wo, bo = w(ks[6], (dim, dim)), b(ks[7], dim)
    gamma = jnp.ones((dim,), jnp.float32)
    beta = jnp.zeros((dim,), jnp.float32)
    w1, b1 = w(ks[8], (dim, 4 * dim)), b(ks[9], 4 * dim)
    w2, b2 = w(ks[10], (4 * dim, dim)), b(ks[11], dim)
    return (wq, bq, wk, bk, wv, bv, wo, bo, gamma, beta, w1, b1, w2, b2)


# ----------------------------------------------------------------------------
# Pure-JAX references (REAL weights, same bf16-operand / f32-accumulate recipe)
# ----------------------------------------------------------------------------
def _mm(a, w, b):
    return jnp.dot(a.astype(jnp.bfloat16), w.astype(jnp.bfloat16),
                   preferred_element_type=jnp.float32) + b


def ref_mlp3(x2d, params):
    w1, b1, w2, b2, w3, b3 = params
    h = jnp.maximum(_mm(x2d, w1, b1), 0.0)
    h = jnp.maximum(_mm(h, w2, b2), 0.0)
    return _mm(h, w3, b3)


def ref_attn_block(x_lne, params, num_heads=NUM_HEADS):
    (wq, bq, wk, bk, wv, bv, wo, bo, gamma, beta, w1, b1, w2, b2) = params
    L, n, e = x_lne.shape
    hd = e // num_heads
    x = jnp.transpose(x_lne, (1, 0, 2)).reshape(n * L, e)
    q = _mm(x, wq, bq).reshape(n, L, num_heads, hd).transpose(0, 2, 1, 3)
    k = _mm(x, wk, bk).reshape(n, L, num_heads, hd).transpose(0, 2, 1, 3)
    v = _mm(x, wv, bv).reshape(n, L, num_heads, hd).transpose(0, 2, 1, 3)
    s = jnp.einsum('nhld,nhmd->nhlm', q.astype(jnp.bfloat16), k.astype(jnp.bfloat16),
                   preferred_element_type=jnp.float32) * (float(hd) ** -0.5)
    p = jax.nn.softmax(s, axis=-1)
    ctx = jnp.einsum('nhlm,nhmd->nhld', p.astype(jnp.bfloat16), v.astype(jnp.bfloat16),
                     preferred_element_type=jnp.float32)
    attn = ctx.transpose(0, 2, 1, 3).reshape(n * L, e)
    attended = _mm(attn, wo, bo)
    y = x + attended
    mean = jnp.mean(y, axis=-1, keepdims=True)
    var = jnp.mean(jnp.square(y - mean), axis=-1, keepdims=True)
    yn = (y - mean) / jnp.sqrt(var + LN_EPS) * gamma + beta
    out = _mm(jnp.maximum(_mm(yn, w1, b1), 0.0), w2, b2)
    return jnp.transpose(out.reshape(n, L, e), (1, 0, 2))


if __name__ == "__main__":
    key = jax.random.PRNGKey(0)
    dim, seq, batch = 32, 8, 2

    k_x1, k_x2, k_p1, k_p2, k_p3 = jax.random.split(key, 5)

    # compress / expand operate on (..., dim)
    x_mlp = jax.random.normal(k_x1, (batch, seq, dim), jnp.float32)
    # attention branch uses torch MHA default layout (L, N, E)
    x_attn = jax.random.normal(k_x2, (seq, batch, dim), jnp.float32)

    compress_params = init_mlp_params(k_p1, [dim, dim // 2, dim // 4, dim])
    expand_params = init_mlp_params(k_p2, [dim, dim * 2, dim * 4, dim])
    attn_params = init_attn_params(k_p3, dim)

    y_compress = jax.block_until_ready(
        memory_transformer_forward(x_mlp, compress_params, 'compress'))
    y_expand = jax.block_until_ready(
        memory_transformer_forward(x_mlp, expand_params, 'expand'))
    y_attn = jax.block_until_ready(
        memory_transformer_forward(x_attn, attn_params, 'attention'))

    # correctness checks against pure-JAX references with the REAL (unpadded) weights
    r_compress = ref_mlp3(x_mlp.reshape(-1, dim), compress_params).reshape(batch, seq, dim)
    r_expand = ref_mlp3(x_mlp.reshape(-1, dim), expand_params).reshape(batch, seq, dim)
    r_attn = ref_attn_block(x_attn, attn_params)

    assert y_compress.shape == (batch, seq, dim)
    assert y_expand.shape == (batch, seq, dim)
    assert y_attn.shape == (seq, batch, dim)
    assert jnp.allclose(y_compress, r_compress, atol=2e-2, rtol=2e-2)
    assert jnp.allclose(y_expand, r_expand, atol=2e-2, rtol=2e-2)
    assert jnp.allclose(y_attn, r_attn, atol=2e-2, rtol=2e-2)

    print("KERNEL_OK")
</pallas_src>

<mosaic_0001>
module attributes {stable_mosaic.version = 11 : i64} {
  func.func @_mlp3_kernel(%arg0: i32, %arg1: memref<8x128xf32, #tpu.memory_space<vmem>>, %arg2: memref<128x128xbf16, #tpu.memory_space<vmem>>, %arg3: memref<1x128xf32, #tpu.memory_space<vmem>>, %arg4: memref<128x128xbf16, #tpu.memory_space<vmem>>, %arg5: memref<1x128xf32, #tpu.memory_space<vmem>>, %arg6: memref<128x128xbf16, #tpu.memory_space<vmem>>, %arg7: memref<1x128xf32, #tpu.memory_space<vmem>>, %arg8: memref<8x128xf32, #tpu.memory_space<vmem>>) attributes {dimension_semantics = [#tpu.dimension_semantics<parallel>], iteration_bounds = array<i64: 2>, scalar_prefetch = 0 : i64, scratch_operands = 0 : i64, tpu.core_type = #tpu.core_type<tc>, window_params = [{transform_indices = @transform_0, window_bounds = array<i64: 8, 128>}, {pipeline_mode = #tpu.pipeline_mode<synchronous>, transform_indices = @transform_1, window_bounds = array<i64: 128, 128>}, {pipeline_mode = #tpu.pipeline_mode<synchronous>, transform_indices = @transform_2, window_bounds = array<i64: 1, 128>}, {pipeline_mode = #tpu.pipeline_mode<synchronous>, transform_indices = @transform_3, window_bounds = array<i64: 128, 128>}, {pipeline_mode = #tpu.pipeline_mode<synchronous>, transform_indices = @transform_4, window_bounds = array<i64: 1, 128>}, {pipeline_mode = #tpu.pipeline_mode<synchronous>, transform_indices = @transform_5, window_bounds = array<i64: 128, 128>}, {pipeline_mode = #tpu.pipeline_mode<synchronous>, transform_indices = @transform_6, window_bounds = array<i64: 1, 128>}, {transform_indices = @transform_7, window_bounds = array<i64: 8, 128>}]} {
    %c0 = arith.constant 0 : index
    %c0_0 = arith.constant 0 : index
    %0 = vector.load %arg1[%c0, %c0_0] : memref<8x128xf32, #tpu.memory_space<vmem>>, vector<8x128xf32>
    %1 = arith.truncf %0 : vector<8x128xf32> to vector<8x128xbf16>
    %c0_1 = arith.constant 0 : index
    %c0_2 = arith.constant 0 : index
    %2 = vector.load %arg2[%c0_1, %c0_2] : memref<128x128xbf16, #tpu.memory_space<vmem>>, vector<128x128xbf16>
    %cst = arith.constant dense<0.000000e+00> : vector<8x128xf32>
    %3 = tpu.matmul %1, %2, %cst {dimension_numbers = #tpu.dot_dimension_numbers<[1], [0], [0], [1], [0, 0, 1, 1], [], []>} : vector<8x128xbf16>, vector<128x128xbf16>, vector<8x128xf32> -> vector<8x128xf32>
    %c0_3 = arith.constant 0 : index
    %c0_4 = arith.constant 0 : index
    %4 = vector.load %arg3[%c0_3, %c0_4] : memref<1x128xf32, #tpu.memory_space<vmem>>, vector<1x128xf32>
    %5 = vector.broadcast %4 : vector<1x128xf32> to vector<8x128xf32>
    %6 = arith.addf %3, %5 : vector<8x128xf32>
    %cst_5 = arith.constant 0.000000e+00 : f32
    %7 = vector.broadcast %cst_5 : f32 to vector<8x128xf32>
    %8 = arith.maximumf %6, %7 : vector<8x128xf32>
    %9 = arith.truncf %8 : vector<8x128xf32> to vector<8x128xbf16>
    %c0_6 = arith.constant 0 : index
    %c0_7 = arith.constant 0 : index
    %10 = vector.load %arg4[%c0_6, %c0_7] : memref<128x128xbf16, #tpu.memory_space<vmem>>, vector<128x128xbf16>
    %cst_8 = arith.constant dense<0.000000e+00> : vector<8x128xf32>
    %11 = tpu.matmul %9, %10, %cst_8 {dimension_numbers = #tpu.dot_dimension_numbers<[1], [0], [0], [1], [0, 0, 1, 1], [], []>} : vector<8x128xbf16>, vector<128x128xbf16>, vector<8x128xf32> -> vector<8x128xf32>
    %c0_9 = arith.constant 0 : index
    %c0_10 = arith.constant 0 : index
    %12 = vector.load %arg5[%c0_9, %c0_10] : memref<1x128xf32, #tpu.memory_space<vmem>>, vector<1x128xf32>
    %13 = vector.broadcast %12 : vector<1x128xf32> to vector<8x128xf32>
    %14 = arith.addf %11, %13 : vector<8x128xf32>
    %cst_11 = arith.constant 0.000000e+00 : f32
    %15 = vector.broadcast %cst_11 : f32 to vector<8x128xf32>
    %16 = arith.maximumf %14, %15 : vector<8x128xf32>
    %17 = arith.truncf %16 : vector<8x128xf32> to vector<8x128xbf16>
    %c0_12 = arith.constant 0 : index
    %c0_13 = arith.constant 0 : index
    %18 = vector.load %arg6[%c0_12, %c0_13] : memref<128x128xbf16, #tpu.memory_space<vmem>>, vector<128x128xbf16>
    %cst_14 = arith.constant dense<0.000000e+00> : vector<8x128xf32>
    %19 = tpu.matmul %17, %18, %cst_14 {dimension_numbers = #tpu.dot_dimension_numbers<[1], [0], [0], [1], [0, 0, 1, 1], [], []>} : vector<8x128xbf16>, vector<128x128xbf16>, vector<8x128xf32> -> vector<8x128xf32>
    %c0_15 = arith.constant 0 : index
    %c0_16 = arith.constant 0 : index
    %20 = vector.load %arg7[%c0_15, %c0_16] : memref<1x128xf32, #tpu.memory_space<vmem>>, vector<1x128xf32>
    %21 = vector.broadcast %20 : vector<1x128xf32> to vector<8x128xf32>
    %22 = arith.addf %19, %21 : vector<8x128xf32>
    %c0_17 = arith.constant 0 : index
    %c0_18 = arith.constant 0 : index
    %23 = vector.load %arg8[%c0_17, %c0_18] : memref<8x128xf32, #tpu.memory_space<vmem>>, vector<8x128xf32>
    tpu.vector_store %arg8[%c0_17, %c0_18], %22 {strides = array<i32>} : memref<8x128xf32, #tpu.memory_space<vmem>>, vector<8x128xf32>,
    return
  }
  func.func @transform_0(%arg0: i32) -> (i32, i32) {
    %c0_i32 = arith.constant 0 : i32
    %c0_i32_0 = arith.constant 0 : i32
    return %arg0, %c0_i32 : i32, i32
  }
  func.func @transform_1(%arg0: i32) -> (i32, i32) {
    %c0_i32 = arith.constant 0 : i32
    %c0_i32_0 = arith.constant 0 : i32
    %c0_i32_1 = arith.constant 0 : i32
    return %c0_i32, %c0_i32_0 : i32, i32
  }
  func.func @transform_2(%arg0: i32) -> (i32, i32) {
    %c0_i32 = arith.constant 0 : i32
    %c0_i32_0 = arith.constant 0 : i32
    %c0_i32_1 = arith.constant 0 : i32
    return %c0_i32, %c0_i32_0 : i32, i32
  }
  func.func @transform_3(%arg0: i32) -> (i32, i32) {
    %c0_i32 = arith.constant 0 : i32
    %c0_i32_0 = arith.constant 0 : i32
    %c0_i32_1 = arith.constant 0 : i32
    return %c0_i32, %c0_i32_0 : i32, i32
  }
  func.func @transform_4(%arg0: i32) -> (i32, i32) {
    %c0_i32 = arith.constant 0 : i32
    %c0_i32_0 = arith.constant 0 : i32
    %c0_i32_1 = arith.constant 0 : i32
    return %c0_i32, %c0_i32_0 : i32, i32
  }
  func.func @transform_5(%arg0: i32) -> (i32, i32) {
    %c0_i32 = arith.constant 0 : i32
    %c0_i32_0 = arith.constant 0 : i32
    %c0_i32_1 = arith.constant 0 : i32
    return %c0_i32, %c0_i32_0 : i32, i32
  }
  func.func @transform_6(%arg0: i32) -> (i32, i32) {
    %c0_i32 = arith.constant 0 : i32
    %c0_i32_0 = arith.constant 0 : i32
    %c0_i32_1 = arith.constant 0 : i32
    return %c0_i32, %c0_i32_0 : i32, i32
  }
  func.func @transform_7(%arg0: i32) -> (i32, i32) {
    %c0_i32 = arith.constant 0 : i32
    %c0_i32_0 = arith.constant 0 : i32
    return %arg0, %c0_i32 : i32, i32
  }
}

module attributes {stable_mosaic.version = 11 : i64} {
  func.func @_mlp3_kernel(%arg0: i32, %arg1: memref<8x128xf32, #tpu.memory_space<vmem>>, %arg2: memref<128x128xbf16, #tpu.memory_space<vmem>>, %arg3: memref<1x128xf32, #tpu.memory_space<vmem>>, %arg4: memref<128x128xbf16, #tpu.memory_space<vmem>>, %arg5: memref<1x128xf32, #tpu.memory_space<vmem>>, %arg6: memref<128x128xbf16, #tpu.memory_space<vmem>>, %arg7: memref<1x128xf32, #tpu.memory_space<vmem>>, %arg8: memref<8x128xf32, #tpu.memory_space<vmem>>) attributes {dimension_semantics = [#tpu.dimension_semantics<parallel>], iteration_bounds = array<i64: 2>, scalar_prefetch = 0 : i64, scratch_operands = 0 : i64, tpu.core_type = #tpu.core_type<tc>, window_params = [{transform_indices = @transform_0, window_bounds = array<i64: 8, 128>}, {pipeline_mode = #tpu.pipeline_mode<synchronous>, transform_indices = @transform_1, window_bounds = array<i64: 128, 128>}, {pipeline_mode = #tpu.pipeline_mode<synchronous>, transform_indices = @transform_2, window_bounds = array<i64: 1, 128>}, {pipeline_mode = #tpu.pipeline_mode<synchronous>, transform_indices = @transform_3, window_bounds = array<i64: 128, 128>}, {pipeline_mode = #tpu.pipeline_mode<synchronous>, transform_indices = @transform_4, window_bounds = array<i64: 1, 128>}, {pipeline_mode = #tpu.pipeline_mode<synchronous>, transform_indices = @transform_5, window_bounds = array<i64: 128, 128>}, {pipeline_mode = #tpu.pipeline_mode<synchronous>, transform_indices = @transform_6, window_bounds = array<i64: 1, 128>}, {transform_indices = @transform_7, window_bounds = array<i64: 8, 128>}]} {
    %c0 = arith.constant 0 : index
    %c0_0 = arith.constant 0 : index
    %0 = vector.load %arg1[%c0, %c0_0] : memref<8x128xf32, #tpu.memory_space<vmem>>, vector<8x128xf32>
    %1 = arith.truncf %0 : vector<8x128xf32> to vector<8x128xbf16>
    %c0_1 = arith.constant 0 : index
    %c0_2 = arith.constant 0 : index
    %2 = vector.load %arg2[%c0_1, %c0_2] : memref<128x128xbf16, #tpu.memory_space<vmem>>, vector<128x128xbf16>
    %cst = arith.constant dense<0.000000e+00> : vector<8x128xf32>
    %3 = tpu.matmul %1, %2, %cst {dimension_numbers = #tpu.dot_dimension_numbers<[1], [0], [0], [1], [0, 0, 1, 1], [], []>} : vector<8x128xbf16>, vector<128x128xbf16>, vector<8x128xf32> -> vector<8x128xf32>
    %c0_3 = arith.constant 0 : index
    %c0_4 = arith.constant 0 : index
    %4 = vector.load %arg3[%c0_3, %c0_4] : memref<1x128xf32, #tpu.memory_space<vmem>>, vector<1x128xf32>
    %5 = vector.broadcast %4 : vector<1x128xf32> to vector<8x128xf32>
    %6 = arith.addf %3, %5 : vector<8x128xf32>
    %cst_5 = arith.constant 0.000000e+00 : f32
    %7 = vector.broadcast %cst_5 : f32 to vector<8x128xf32>
    %8 = arith.maximumf %6, %7 : vector<8x128xf32>
    %9 = arith.truncf %8 : vector<8x128xf32> to vector<8x128xbf16>
    %c0_6 = arith.constant 0 : index
    %c0_7 = arith.constant 0 : index
    %10 = vector.load %arg4[%c0_6, %c0_7] : memref<128x128xbf16, #tpu.memory_space<vmem>>, vector<128x128xbf16>
    %cst_8 = arith.constant dense<0.000000e+00> : vector<8x128xf32>
    %11 = tpu.matmul %9, %10, %cst_8 {dimension_numbers = #tpu.dot_dimension_numbers<[1], [0], [0], [1], [0, 0, 1, 1], [], []>} : vector<8x128xbf16>, vector<128x128xbf16>, vector<8x128xf32> -> vector<8x128xf32>
    %c0_9 = arith.constant 0 : index
    %c0_10 = arith.constant 0 : index
    %12 = vector.load %arg5[%c0_9, %c0_10] : memref<1x128xf32, #tpu.memory_space<vmem>>, vector<1x128xf32>
    %13 = vector.broadcast %12 : vector<1x128xf32> to vector<8x128xf32>
    %14 = arith.addf %11, %13 : vector<8x128xf32>
    %cst_11 = arith.constant 0.000000e+00 : f32
    %15 = vector.broadcast %cst_11 : f32 to vector<8x128xf32>
    %16 = arith.maximumf %14, %15 : vector<8x128xf32>
    %17 = arith.truncf %16 : vector<8x128xf32> to vector<8x128xbf16>
    %c0_12 = arith.constant 0 : index
    %c0_13 = arith.constant 0 : index
    %18 = vector.load %arg6[%c0_12, %c0_13] : memref<128x128xbf16, #tpu.memory_space<vmem>>, vector<128x128xbf16>
    %cst_14 = arith.constant dense<0.000000e+00> : vector<8x128xf32>
    %19 = tpu.matmul %17, %18, %cst_14 {dimension_numbers = #tpu.dot_dimension_numbers<[1], [0], [0], [1], [0, 0, 1, 1], [], []>} : vector<8x128xbf16>, vector<128x128xbf16>, vector<8x128xf32> -> vector<8x128xf32>
    %c0_15 = arith.constant 0 : index
    %c0_16 = arith.constant 0 : index
    %20 = vector.load %arg7[%c0_15, %c0_16] : memref<1x128xf32, #tpu.memory_space<vmem>>, vector<1x128xf32>
    %21 = vector.broadcast %20 : vector<1x128xf32> to vector<8x128xf32>
    %22 = arith.addf %19, %21 : vector<8x128xf32>
    %c0_17 = arith.constant 0 : index
    %c0_18 = arith.constant 0 : index
    %23 = vector.load %arg8[%c0_17, %c0_18] : memref<8x128xf32, #tpu.memory_space<vmem>>, vector<8x128xf32>
    tpu.vector_store %arg8[%c0_17, %c0_18], %22 {strides = array<i32>} : memref<8x128xf32, #tpu.memory_space<vmem>>, vector<8x128xf32>,
    return
  }
  func.func @transform_0(%arg0: i32) -> (i32, i32) {
    %c0_i32 = arith.constant 0 : i32
    %c0_i32_0 = arith.constant 0 : i32
    return %arg0, %c0_i32 : i32, i32
  }
  func.func @transform_1(%arg0: i32) -> (i32, i32) {
    %c0_i32 = arith.constant 0 : i32
    %c0_i32_0 = arith.constant 0 : i32
    %c0_i32_1 = arith.constant 0 : i32
    return %c0_i32, %c0_i32_0 : i32, i32
  }
  func.func @transform_2(%arg0: i32) -> (i32, i32) {
    %c0_i32 = arith.constant 0 : i32
    %c0_i32_0 = arith.constant 0 : i32
    %c0_i32_1 = arith.constant 0 : i32
    return %c0_i32, %c0_i32_0 : i32, i32
  }
  func.func @transform_3(%arg0: i32) -> (i32, i32) {
    %c0_i32 = arith.constant 0 : i32
    %c0_i32_0 = arith.constant 0 : i32
    %c0_i32_1 = arith.constant 0 : i32
    return %c0_i32, %c0_i32_0 : i32, i32
  }
  func.func @transform_4(%arg0: i32) -> (i32, i32) {
    %c0_i32 = arith.constant 0 : i32
    %c0_i32_0 = arith.constant 0 : i32
    %c0_i32_1 = arith.constant 0 : i32
    return %c0_i32, %c0_i32_0 : i32, i32
  }
  func.func @transform_5(%arg0: i32) -> (i32, i32) {
    %c0_i32 = arith.constant 0 : i32
    %c0_i32_0 = arith.constant 0 : i32
    %c0_i32_1 = arith.constant 0 : i32
    return %c0_i32, %c0_i32_0 : i32, i32
  }
  func.func @transform_6(%arg0: i32) -> (i32, i32) {
    %c0_i32 = arith.constant 0 : i32
    %c0_i32_0 = arith.constant 0 : i32
    %c0_i32_1 = arith.constant 0 : i32
    return %c0_i32, %c0_i32_0 : i32, i32
  }
  func.func @transform_7(%arg0: i32) -> (i32, i32) {
    %c0_i32 = arith.constant 0 : i32
    %c0_i32_0 = arith.constant 0 : i32
    return %arg0, %c0_i32 : i32, i32
  }
}

</mosaic_0001>

<llo_original>
// kernel: tpu_custom_call.1
$region0: #{tpu_custom_call.1}
  #allocation0 [shape = 'u32[]', space=smem, size = 0x4, offset = 0x4, fixed_abs, tag = 'smem constant byte address 0x4 - core index']
  #allocation1 [shape = 'u32[72,128]{1,0:T(1,128)}', space=vmem, size = 0x9000, scoped, tag = 'internal scratch']
  %s0 = inlined_call_operand.hbm [shape: f32[16,128], index: 0, kind: input, shape index: {}]
  %s1 = inlined_call_operand.hbm [shape: bf16[128,128], index: 1, kind: input, shape index: {}]
  %s2 = inlined_call_operand.vmem [shape: f32[1,128], index: 2, kind: input, shape index: {}]
  %s3 = inlined_call_operand.hbm [shape: bf16[128,128], index: 3, kind: input, shape index: {}]
  %s4 = inlined_call_operand.vmem [shape: f32[1,128], index: 4, kind: input, shape index: {}]
  %s5 = inlined_call_operand.hbm [shape: bf16[128,128], index: 5, kind: input, shape index: {}]
  %s6 = inlined_call_operand.vmem [shape: f32[1,128], index: 6, kind: input, shape index: {}]
  %s7 = inlined_call_operand.hbm [shape: f32[16,128], index: 7, kind: output, shape index: {}]
  %s8 = sld [smem:[#allocation0]]
  $region77: #{tpu_custom_call.1} parent=0
    _
  %s10 = ssub.s32 1, %s8
  %s11 = scalar_select 0, %s10, %s8
  $region1: #{tpu_custom_call.1} parent=0
    #allocation2 [shape = 'u8[8192]{0}', space=vmem, size = 0x2000, scoped, tag = 'input window, operand 0']
    #allocation3 [shape = 's32[2]{0}', space=sflag, size = 0x8, scoped, tag = 'scoped memory for tpu_custom_call.1']
    #allocation4 [shape = 's32[2]{0}', space=sflag, size = 0x8, scoped, tag = 'scoped memory for tpu_custom_call.1']
    #allocation5 [shape = 'u8[32768]{0}', space=vmem, size = 0x8000, scoped, tag = 'input window, operand 1, single buffered']
    #allocation6 [shape = 's32[1]{0}', space=sflag, size = 0x4, scoped, tag = 'scoped memory for tpu_custom_call.1']
    #allocation7 [shape = 'u8[32768]{0}', space=vmem, size = 0x8000, scoped, tag = 'input window, operand 3, single buffered']
    #allocation8 [shape = 'u8[32768]{0}', space=vmem, size = 0x8000, scoped, tag = 'input window, operand 5, single buffered']
    #allocation9 [shape = 's32[1]{0}', space=sflag, size = 0x4, scoped, tag = 'scoped memory for tpu_custom_call.1']
    #allocation10 [shape = 'u8[8192]{0}', space=vmem, size = 0x2000, scoped, tag = 'output window, operand 0']
    %12 = vsyncpa [#allocation3], 0
    %s13 = scalar_lea.sflag [#allocation3], 1
    %14 = vsyncpa %s13, 0
    %15 = vsyncpa [#allocation6], 0
    %16 = vsyncpa [#allocation9], 0
    %17 = vsyncpa [#allocation4], 0
    %s18 = scalar_lea.sflag [#allocation4], 1
    %19 = vsyncpa %s18, 0
    loop: start=0, step=1, limit=4
    $region2: #{tpu_custom_call.1} parent=1 // loop_pre_header
      _
    $region3: #{tpu_custom_call.1} parent=1 // loop_header
      %s21 = sphi 0, %s25
      %p22 = scmp.ge.s32.totalorder %s21, 4
      %s31 = sphi 0, %s33
      %s34 = sphi 0, %s31
      %s35 = sphi 0, %s34
      %s51 = sphi 0, %s35
      %s55 = sphi 0, %s55
      %s57 = sphi 0, %s55
      %s58 = sphi 0, %s57
      %s72 = sphi 0, %s58
      %s76 = sphi 0, %s76
      %s78 = sphi 0, %s76
      %s79 = sphi 0, %s78
      %s93 = sphi 0, %s79
      %s97 = sphi 0, %s97
      %s99 = sphi 0, %s97
      %s100 = sphi 0, %s99
      %s114 = sphi 0, %s100
      %s118 = sphi 0, %s118
      %s120 = sphi 0, %s118
      %s121 = sphi 0, %s120
      %s135 = sphi 0, %s121
      %s139 = sphi 0, %s139
      %s141 = sphi 0, %s139
      %s142 = sphi 0, %s141
      %s156 = sphi 0, %s142
      %s160 = sphi 0, %s160
      %s162 = sphi 0, %s160
      %s163 = sphi 0, %s162
      %s177 = sphi 0, %s163
      %s183 = sphi 0, %s185
      %s186 = sphi 0, %s183
      %s187 = sphi 0, %s186
      %s203 = sphi 0, %s187
    $region4: #{tpu_custom_call.1} parent=1 // loop_header_branch
      %24 = sbr.rel (%p22) target = $region8
    $region5: #{tpu_custom_call.1} parent=1 // loop_body
      %s26 = ssub.s32 %s21, 1
      %s27 = ssub.s32 %s21, 2
      %s28 = sadd.s32 %s21, 1
      %s29 = ssub.s32 %s21, %s28
      %p30 = scmp.eq.s32.totalorder %s29, 0
      %s32 = sadd.s32 %s31, 1
      %s33 = scalar_select %p30, %s31, %s32
      %p36 = pneg %p30
      %p37 = scmp.eq.s32.totalorder %s21, 1
      %p38 = por %p36, %p37
      %p39 = scmp.ne.s32.totalorder %s31, %s34
      %p40 = scmp.eq.s32.totalorder %s21, 0
      %p41 = por %p39, %p40
      %p42 = scmp.ne.s32.totalorder %s31, %s34
      %p43 = scmp.eq.s32.totalorder %s26, 1
      %p44 = por %p42, %p43
      %p45 = scmp.ne.s32.totalorder %s34, %s35
      %p46 = scmp.eq.s32.totalorder %s26, 0
      %p47 = por %p45, %p46
      %p48 = scmp.ne.s32.totalorder %s34, %s35
      %p49 = scmp.eq.s32.totalorder %s27, 1
      %p50 = por %p48, %p49
      %p52 = scmp.ne.s32.totalorder %s35, %s51
      %p53 = scmp.eq.s32.totalorder %s27, 0
      %p54 = por %p52, %p53
      %s56 = sadd.s32 %s55, 1
      %p59 = scmp.eq.s32.totalorder %s21, 1
      %p60 = scmp.ne.s32.totalorder %s55, %s57
      %p61 = scmp.eq.s32.totalorder %s21, 0
      %p62 = por %p60, %p61
      %p63 = scmp.ne.s32.totalorder %s55, %s57
      %p64 = scmp.eq.s32.totalorder %s26, 1
      %p65 = por %p63, %p64
      %p66 = scmp.ne.s32.totalorder %s57, %s58
      %p67 = scmp.eq.s32.totalorder %s26, 0
      %p68 = por %p66, %p67
      %p69 = scmp.ne.s32.totalorder %s57, %s58
      %p70 = scmp.eq.s32.totalorder %s27, 1
      %p71 = por %p69, %p70
      %p73 = scmp.ne.s32.totalorder %s58, %s72
      %p74 = scmp.eq.s32.totalorder %s27, 0
      %p75 = por %p73, %p74
      %s77 = sadd.s32 %s76, 1
      %p80 = scmp.eq.s32.totalorder %s21, 1
      %p81 = scmp.ne.s32.totalorder %s76, %s78
      %p82 = scmp.eq.s32.totalorder %s21, 0
      %p83 = por %p81, %p82
      %p84 = scmp.ne.s32.totalorder %s76, %s78
      %p85 = scmp.eq.s32.totalorder %s26, 1
      %p86 = por %p84, %p85
      %p87 = scmp.ne.s32.totalorder %s78, %s79
      %p88 = scmp.eq.s32.totalorder %s26, 0
      %p89 = por %p87, %p88
      %p90 = scmp.ne.s32.totalorder %s78, %s79
      %p91 = scmp.eq.s32.totalorder %s27, 1
      %p92 = por %p90, %p91
      %p94 = scmp.ne.s32.totalorder %s79, %s93
      %p95 = scmp.eq.s32.totalorder %s27, 0
      %p96 = por %p94, %p95
      %s98 = sadd.s32 %s97, 1
      %p101 = scmp.eq.s32.totalorder %s21, 1
      %p102 = scmp.ne.s32.totalorder %s97, %s99
      %p103 = scmp.eq.s32.totalorder %s21, 0
      %p104 = por %p102, %p103
      %p105 = scmp.ne.s32.totalorder %s97, %s99
      %p106 = scmp.eq.s32.totalorder %s26, 1
      %p107 = por %p105, %p106
      %p108 = scmp.ne.s32.totalorder %s99, %s100
      %p109 = scmp.eq.s32.totalorder %s26, 0
      %p110 = por %p108, %p109
      %p111 = scmp.ne.s32.totalorder %s99, %s100
      %p112 = scmp.eq.s32.totalorder %s27, 1
      %p113 = por %p111, %p112
      %p115 = scmp.ne.s32.totalorder %s100, %s114
      %p116 = scmp.eq.s32.totalorder %s27, 0
      %p117 = por %p115, %p116
      %s119 = sadd.s32 %s118, 1
      %p122 = scmp.eq.s32.totalorder %s21, 1
      %p123 = scmp.ne.s32.totalorder %s118, %s120
      %p124 = scmp.eq.s32.totalorder %s21, 0
      %p125 = por %p123, %p124
      %p126 = scmp.ne.s32.totalorder %s118, %s120
      %p127 = scmp.eq.s32.totalorder %s26, 1
      %p128 = por %p126, %p127
      %p129 = scmp.ne.s32.totalorder %s120, %s121
      %p130 = scmp.eq.s32.totalorder %s26, 0
      %p131 = por %p129, %p130
      %p132 = scmp.ne.s32.totalorder %s120, %s121
      %p133 = scmp.eq.s32.totalorder %s27, 1
      %p134 = por %p132, %p133
      %p136 = scmp.ne.s32.totalorder %s121, %s135
      %p137 = scmp.eq.s32.totalorder %s27, 0
      %p138 = por %p136, %p137
      %s140 = sadd.s32 %s139, 1
      %p143 = scmp.eq.s32.totalorder %s21, 1
      %p144 = scmp.ne.s32.totalorder %s139, %s141
      %p145 = scmp.eq.s32.totalorder %s21, 0
      %p146 = por %p144, %p145
      %p147 = scmp.ne.s32.totalorder %s139, %s141
      %p148 = scmp.eq.s32.totalorder %s26, 1
      %p149 = por %p147, %p148
      %p150 = scmp.ne.s32.totalorder %s141, %s142
      %p151 = scmp.eq.s32.totalorder %s26, 0
      %p152 = por %p150, %p151
      %p153 = scmp.ne.s32.totalorder %s141, %s142
      %p154 = scmp.eq.s32.totalorder %s27, 1
      %p155 = por %p153, %p154
      %p157 = scmp.ne.s32.totalorder %s142, %s156
      %p158 = scmp.eq.s32.totalorder %s27, 0
      %p159 = por %p157, %p158
      %s161 = sadd.s32 %s160, 1
      %p164 = scmp.eq.s32.totalorder %s21, 1
      %p165 = scmp.ne.s32.totalorder %s160, %s162
      %p166 = scmp.eq.s32.totalorder %s21, 0
      %p167 = por %p165, %p166
      %p168 = scmp.ne.s32.totalorder %s160, %s162
      %p169 = scmp.eq.s32.totalorder %s26, 1
      %p170 = por %p168, %p169
      %p171 = scmp.ne.s32.totalorder %s162, %s163
      %p172 = scmp.eq.s32.totalorder %s26, 0
      %p173 = por %p171, %p172
      %p174 = scmp.ne.s32.totalorder %s162, %s163
      %p175 = scmp.eq.s32.totalorder %s27, 1
      %p176 = por %p174, %p175
      %p178 = scmp.ne.s32.totalorder %s163, %s177
      %p179 = scmp.eq.s32.totalorder %s27, 0
      %p180 = por %p178, %p179
      %s181 = ssub.s32 %s21, %s28
      %p182 = scmp.eq.s32.totalorder %s181, 0
      %s184 = sadd.s32 %s183, 1
      %s185 = scalar_select %p182, %s183, %s184
      %p188 = pneg %p182
      %p189 = scmp.eq.s32.totalorder %s21, 1
      %p190 = por %p188, %p189
      %p191 = scmp.ne.s32.totalorder %s183, %s186
      %p192 = scmp.eq.s32.totalorder %s21, 0
      %p193 = por %p191, %p192
      %p194 = scmp.ne.s32.totalorder %s183, %s186
      %p195 = scmp.eq.s32.totalorder %s26, 1
      %p196 = por %p194, %p195
      %p197 = scmp.ne.s32.totalorder %s186, %s187
      %p198 = scmp.eq.s32.totalorder %s26, 0
      %p199 = por %p197, %p198
      %p200 = scmp.ne.s32.totalorder %s186, %s187
      %p201 = scmp.eq.s32.totalorder %s27, 1
      %p202 = por %p200, %p201
      %p204 = scmp.ne.s32.totalorder %s187, %s203
      %p205 = scmp.eq.s32.totalorder %s27, 0
      %p206 = por %p204, %p205
      %p207 = scmp.le.s32.totalorder 1, %s21
      %p208 = scmp.lt.s32.totalorder %s21, 3
      %p209 = pnand %p207, %p208
      %p210 = pneg %p209
      // Predicated region
      $region9: #{tpu_custom_call.1} parent=5 // pred_check
        _
      $region10: #{tpu_custom_call.1} parent=5 // pred_check_branch
        %212 = sbr.rel (%p209) target = $region12
      $region11: #{tpu_custom_call.1} parent=5 // pred_region
        %s213 = ssub.s32 %s21, 1
        // Predicated region
        $region13: #{tpu_custom_call.1} parent=11 // pred_check
          %p214 = pneg %p68
        $region14: #{tpu_custom_call.1} parent=11 // pred_check_branch
          %216 = sbr.rel (%p214) target = $region16
        $region15: #{tpu_custom_call.1} parent=11 // pred_region
          %218 = vsyncadd [#allocation6], 0
          %s219 = sshll.u32 %s1, 4
          %s220 = int_to_ptr.hbm [resolvable:$true] %s219
          %s221 = sshll.u32 [#allocation5], 4
          %s222 = int_to_ptr.vmem [resolvable:$true] %s221
          %227 = dma.hbm_to_vmem [thread:$0]  %s220, 1024, %s222, [#allocation6], 64, 64, 4
        $region16: #{tpu_custom_call.1} parent=11 // pred_fallthru
          _
        // Predicated region
        $region17: #{tpu_custom_call.1} parent=11 // pred_check
          %p228 = pneg %p89
        $region18: #{tpu_custom_call.1} parent=11 // pred_check_branch
          %230 = sbr.rel (%p228) target = $region20
        $region19: #{tpu_custom_call.1} parent=11 // pred_region
          _
        $region20: #{tpu_custom_call.1} parent=11 // pred_fallthru
          _
        // Predicated region
        $region21: #{tpu_custom_call.1} parent=11 // pred_check
          %p231 = pneg %p110
        $region22: #{tpu_custom_call.1} parent=11 // pred_check_branch
          %233 = sbr.rel (%p231) target = $region24
        $region23: #{tpu_custom_call.1} parent=11 // pred_region
          %235 = vsyncadd [#allocation6], 0
          %s236 = sshll.u32 %s3, 4
          %s237 = int_to_ptr.hbm [resolvable:$true] %s236
          %s238 = sshll.u32 [#allocation7], 4
          %s239 = int_to_ptr.vmem [resolvable:$true] %s238
          %244 = dma.hbm_to_vmem [thread:$0]  %s237, 1024, %s239, [#allocation6], 64, 64, 4
        $region24: #{tpu_custom_call.1} parent=11 // pred_fallthru
          _
        // Predicated region
        $region25: #{tpu_custom_call.1} parent=11 // pred_check
          %p245 = pneg %p131
        $region26: #{tpu_custom_call.1} parent=11 // pred_check_branch
          %247 = sbr.rel (%p245) target = $region28
        $region27: #{tpu_custom_call.1} parent=11 // pred_region
          _
        $region28: #{tpu_custom_call.1} parent=11 // pred_fallthru
          _
        // Predicated region
        $region29: #{tpu_custom_call.1} parent=11 // pred_check
          %p248 = pneg %p152
        $region30: #{tpu_custom_call.1} parent=11 // pred_check_branch
          %250 = sbr.rel (%p248) target = $region32
        $region31: #{tpu_custom_call.1} parent=11 // pred_region
          %252 = vsyncadd [#allocation9], 0
          %s253 = sshll.u32 %s5, 4
          %s254 = int_to_ptr.hbm [resolvable:$true] %s253
          %s255 = sshll.u32 [#allocation8], 4
          %s256 = int_to_ptr.vmem [resolvable:$true] %s255
          %261 = dma.hbm_to_vmem [thread:$0]  %s254, 1024, %s256, [#allocation9], 64, 64, 4
        $region32: #{tpu_custom_call.1} parent=11 // pred_fallthru
          _
        // Predicated region
        $region33: #{tpu_custom_call.1} parent=11 // pred_check
          %p262 = pneg %p173
        $region34: #{tpu_custom_call.1} parent=11 // pred_check_branch
          %264 = sbr.rel (%p262) target = $region36
        $region35: #{tpu_custom_call.1} parent=11 // pred_region
          _
        $region36: #{tpu_custom_call.1} parent=11 // pred_fallthru
          _
      $region12: #{tpu_custom_call.1} parent=5 // pred_fallthru
        _
      %p265 = scmp.lt.s32.totalorder %s21, 2
      // Predicated region
      $region37: #{tpu_custom_call.1} parent=5 // pred_check
        %p266 = pneg %p265
      $region38: #{tpu_custom_call.1} parent=5 // pred_check_branch
        %268 = sbr.rel (%p266) target = $region40
      $region39: #{tpu_custom_call.1} parent=5 // pred_region
        // Predicated region
        $region41: #{tpu_custom_call.1} parent=39 // pred_check
          %p269 = pneg %p41
        $region42: #{tpu_custom_call.1} parent=39 // pred_check_branch
          %271 = sbr.rel (%p269) target = $region44
        $region43: #{tpu_custom_call.1} parent=39 // pred_region
          %s272 = sand.u32 %s31, 1
          %s273 = scalar_lea.sflag [#allocation3], %s272
          %s274 = sand.u32 %s31, 1
          %s275 = smul.addr %s274, 8
          %s276 = scalar_lea.vmem [#allocation2], %s275
          %278 = vsyncadd %s273, 0
          %s279 = smul.addr %s21, 8
          %s280 = scalar_lea.hbm %s0, %s279
          %s282 = sshll.u32 %s280, 4
          %s283 = int_to_ptr.hbm [resolvable:$true] %s282
          %s284 = sshll.u32 %s276, 4
          %s285 = int_to_ptr.vmem [resolvable:$true] %s284
          %287 = dma.hbm_to_vmem [thread:$0]  %s283, 128, %s285, %s273
        $region44: #{tpu_custom_call.1} parent=39 // pred_fallthru
          _
      $region40: #{tpu_custom_call.1} parent=5 // pred_fallthru
        _
      %p288 = scmp.le.s32.totalorder 1, %s21
      %p289 = scmp.lt.s32.totalorder %s21, 3
      %p290 = pnand %p288, %p289
      %p291 = pneg %p290
      // Predicated region
      $region45: #{tpu_custom_call.1} parent=5 // pred_check
        _
      $region46: #{tpu_custom_call.1} parent=5 // pred_check_branch
        %293 = sbr.rel (%p290) target = $region48
      $region47: #{tpu_custom_call.1} parent=5 // pred_region
        %s294 = ssub.s32 %s21, 1
        %s295 = sand.u32 %s34, 1
        %s296 = scalar_lea.sflag [#allocation3], %s295
        %s297 = sand.u32 %s34, 1
        %s298 = smul.addr %s297, 8
        %s299 = scalar_lea.vmem [#allocation2], %s298
        // Predicated region
        $region49: #{tpu_custom_call.1} parent=47 // pred_check
          %p300 = pneg %p47
        $region50: #{tpu_custom_call.1} parent=47 // pred_check_branch
          %302 = sbr.rel (%p300) target = $region52
        $region51: #{tpu_custom_call.1} parent=47 // pred_region
          %304 = dma.done %s296, 128
        $region52: #{tpu_custom_call.1} parent=47 // pred_fallthru
          _
        // Predicated region
        $region53: #{tpu_custom_call.1} parent=47 // pred_check
          %p305 = pneg %p68
        $region54: #{tpu_custom_call.1} parent=47 // pred_check_branch
          %307 = sbr.rel (%p305) target = $region56
        $region55: #{tpu_custom_call.1} parent=47 // pred_region
          %309 = dma.done [#allocation6], 1024
        $region56: #{tpu_custom_call.1} parent=47 // pred_fallthru
          _
        // Predicated region
        $region57: #{tpu_custom_call.1} parent=47 // pred_check
          %p310 = pneg %p110
        $region58: #{tpu_custom_call.1} parent=47 // pred_check_branch
          %312 = sbr.rel (%p310) target = $region60
        $region59: #{tpu_custom_call.1} parent=47 // pred_region
          %314 = dma.done [#allocation6], 1024
        $region60: #{tpu_custom_call.1} parent=47 // pred_fallthru
          _
        // Predicated region
        $region61: #{tpu_custom_call.1} parent=47 // pred_check
          %p315 = pneg %p152
        $region62: #{tpu_custom_call.1} parent=47 // pred_check_branch
          %317 = sbr.rel (%p315) target = $region64
        $region63: #{tpu_custom_call.1} parent=47 // pred_region
          %319 = dma.done [#allocation9], 1024
        $region64: #{tpu_custom_call.1} parent=47 // pred_fallthru
          _
        %s320 = sand.u32 %s34, 1
        %s321 = scalar_lea.sflag [#allocation3], %s320
        %s322 = sand.u32 %s34, 1
        %s323 = smul.addr %s322, 8
        %s324 = scalar_lea.vmem [#allocation2], %s323
        %p325 = pneg %p47
        %p326 = pneg %p44
        %p327 = pneg %p68
        %p328 = pneg %p65
        %p329 = pneg %p89
        %p330 = pneg %p86
        %p331 = pneg %p110
        %p332 = pneg %p107
        %p333 = pneg %p131
        %p334 = pneg %p128
        %p335 = pneg %p152
        %p336 = pneg %p149
        %p337 = pneg %p173
        %p338 = pneg %p170
        %p339 = pneg %p199
        %p340 = pneg %p196
        %s341 = sand.u32 %s186, 1
        %s342 = scalar_lea.sflag [#allocation4], %s341
        %s343 = sand.u32 %s186, 1
        %s344 = smul.addr %s343, 8
        %s345 = scalar_lea.vmem [#allocation10], %s344
        %v346 = vld [vmem:[%s299] sm:$0xff]
        %v347 = vpack.c.bf16 %v346, %v346
        %v348 = vld [vmem:[#allocation5] sm:$0xf]
        %v349 = vld [vmem:[#allocation5 + $0x4] sm:$0xf]
        %v350 = vld [vmem:[#allocation5 + $0x8] sm:$0xf]
        %v351 = vld [vmem:[#allocation5 + $0xc] sm:$0xf]
        %v352 = vld [vmem:[#allocation5 + $0x10] sm:$0xf]
        %v353 = vld [vmem:[#allocation5 + $0x14] sm:$0xf]
        %v354 = vld [vmem:[#allocation5 + $0x18] sm:$0xf]
        %v355 = vld [vmem:[#allocation5 + $0x1c] sm:$0xf]
        %v356 = vld [vmem:[#allocation5 + $0x20] sm:$0xf]
        %v357 = vld [vmem:[#allocation5 + $0x24] sm:$0xf]
        %v358 = vld [vmem:[#allocation5 + $0x28] sm:$0xf]
        %v359 = vld [vmem:[#allocation5 + $0x2c] sm:$0xf]
        %v360 = vld [vmem:[#allocation5 + $0x30] sm:$0xf]
        %v361 = vld [vmem:[#allocation5 + $0x34] sm:$0xf]
        %v362 = vld [vmem:[#allocation5 + $0x38] sm:$0xf]
        %v363 = vld [vmem:[#allocation5 + $0x3c] sm:$0xf]
        %v364 = vld [vmem:[%s2] sm:$0x1]
        %v366 = vperm.slane %v364, 0
        %v384 = vunpack.c.l.b16 %v348
        %v385 = vunpack.c.l.b16 %v349
        %v386 = vunpack.c.l.b16 %v350
        %v387 = vunpack.c.l.b16 %v351
        %v388 = vunpack.c.l.b16 %v352
        %v389 = vunpack.c.l.b16 %v353
        %v390 = vunpack.c.l.b16 %v354
        %v391 = vunpack.c.l.b16 %v355
        %v392 = vunpack.c.l.b16 %v356
        %v393 = vunpack.c.l.b16 %v357
        %v394 = vunpack.c.l.b16 %v358
        %v395 = vunpack.c.l.b16 %v359
        %v396 = vunpack.c.l.b16 %v360
        %v397 = vunpack.c.l.b16 %v361
        %v398 = vunpack.c.l.b16 %v362
        %v399 = vunpack.c.l.b16 %v363
        %v400 = vpack.c.b16 %v385, %v384
        %v401 = vpack.c.b16 %v387, %v386
        %v402 = vpack.c.b16 %v389, %v388
        %v403 = vpack.c.b16 %v391, %v390
        %v404 = vpack.c.b16 %v393, %v392
        %v405 = vpack.c.b16 %v395, %v394
        %v406 = vpack.c.b16 %v397, %v396
        %v407 = vpack.c.b16 %v399, %v398
        %416 = vmatpush.bf16.msra.mxu0 %v407
        %417 = vmatpush.bf16.msra.mxu0 %v406
        %418 = vmatpush.bf16.msra.mxu0 %v405
        %419 = vmatpush.bf16.msra.mxu0 %v404
        %420 = vmatpush.bf16.msra.mxu0 %v403
        %421 = vmatpush.bf16.msra.mxu0 %v402
        %422 = vmatpush.bf16.msra.mxu0 %v401
        %423 = vmatpush.bf16.msra.mxu0 %v400
        %424 = vmatmul.bf16.gmra.mxu0 %v347
        %v425 = vpop.f32.mrf.mxu0
        %v426 = vadd.f32 %v366, %v425
        %v427 = vpop.f32.mrf.mxu0
        %428 = vdwg.mxu0
        %v429 = vmax.f32 %v426, 0.0
        %v430 = vpack.c.bf16 %v429, %v429
        %v431 = vld [vmem:[#allocation7] sm:$0xf]
        %v432 = vld [vmem:[#allocation7 + $0x4] sm:$0xf]
        %v433 = vld [vmem:[#allocation7 + $0x8] sm:$0xf]
        %v434 = vld [vmem:[#allocation7 + $0xc] sm:$0xf]
        %v435 = vld [vmem:[#allocation7 + $0x10] sm:$0xf]
        %v436 = vld [vmem:[#allocation7 + $0x14] sm:$0xf]
        %v437 = vld [vmem:[#allocation7 + $0x18] sm:$0xf]
        %v438 = vld [vmem:[#allocation7 + $0x1c] sm:$0xf]
        %v439 = vld [vmem:[#allocation7 + $0x20] sm:$0xf]
        %v440 = vld [vmem:[#allocation7 + $0x24] sm:$0xf]
        %v441 = vld [vmem:[#allocation7 + $0x28] sm:$0xf]
        %v442 = vld [vmem:[#allocation7 + $0x2c] sm:$0xf]
        %v443 = vld [vmem:[#allocation7 + $0x30] sm:$0xf]
        %v444 = vld [vmem:[#allocation7 + $0x34] sm:$0xf]
        %v445 = vld [vmem:[#allocation7 + $0x38] sm:$0xf]
        %v446 = vld [vmem:[#allocation7 + $0x3c] sm:$0xf]
        %v447 = vld [vmem:[%s4] sm:$0x1]
        %v449 = vperm.slane %v447, 0
        %v467 = vunpack.c.l.b16 %v431
        %v468 = vunpack.c.l.b16 %v432
        %v469 = vunpack.c.l.b16 %v433
        %v470 = vunpack.c.l.b16 %v434
        %v471 = vunpack.c.l.b16 %v435
        %v472 = vunpack.c.l.b16 %v436
        %v473 = vunpack.c.l.b16 %v437
        %v474 = vunpack.c.l.b16 %v438
        %v475 = vunpack.c.l.b16 %v439
        %v476 = vunpack.c.l.b16 %v440
        %v477 = vunpack.c.l.b16 %v441
        %v478 = vunpack.c.l.b16 %v442
        %v479 = vunpack.c.l.b16 %v443
        %v480 = vunpack.c.l.b16 %v444
        %v481 = vunpack.c.l.b16 %v445
        %v482 = vunpack.c.l.b16 %v446
        %v483 = vpack.c.b16 %v468, %v467
        %v484 = vpack.c.b16 %v470, %v469
        %v485 = vpack.c.b16 %v472, %v471
        %v486 = vpack.c.b16 %v474, %v473
        %v487 = vpack.c.b16 %v476, %v475
        %v488 = vpack.c.b16 %v478, %v477
        %v489 = vpack.c.b16 %v480, %v479
        %v490 = vpack.c.b16 %v482, %v481
        %499 = vmatpush.bf16.msra.mxu0 %v490
        %500 = vmatpush.bf16.msra.mxu0 %v489
        %501 = vmatpush.bf16.msra.mxu0 %v488
        %502 = vmatpush.bf16.msra.mxu0 %v487
        %503 = vmatpush.bf16.msra.mxu0 %v486
        %504 = vmatpush.bf16.msra.mxu0 %v485
        %505 = vmatpush.bf16.msra.mxu0 %v484
        %506 = vmatpush.bf16.msra.mxu0 %v483
        %507 = vmatmul.bf16.gmra.mxu0 %v430
        %v508 = vpop.f32.mrf.mxu0
        %v509 = vadd.f32 %v449, %v508
        %v510 = vpop.f32.mrf.mxu0
        %511 = vdwg.mxu0
        %v512 = vmax.f32 %v509, 0.0
        %v513 = vpack.c.bf16 %v512, %v512
        %v514 = vld [vmem:[#allocation8] sm:$0xf]
        %v515 = vld [vmem:[#allocation8 + $0x4] sm:$0xf]
        %v516 = vld [vmem:[#allocation8 + $0x8] sm:$0xf]
        %v517 = vld [vmem:[#allocation8 + $0xc] sm:$0xf]
        %v518 = vld [vmem:[#allocation8 + $0x10] sm:$0xf]
        %v519 = vld [vmem:[#allocation8 + $0x14] sm:$0xf]
        %v520 = vld [vmem:[#allocation8 + $0x18] sm:$0xf]
        %v521 = vld [vmem:[#allocation8 + $0x1c] sm:$0xf]
        %v522 = vld [vmem:[#allocation8 + $0x20] sm:$0xf]
        %v523 = vld [vmem:[#allocation8 + $0x24] sm:$0xf]
        %v524 = vld [vmem:[#allocation8 + $0x28] sm:$0xf]
        %v525 = vld [vmem:[#allocation8 + $0x2c] sm:$0xf]
        %v526 = vld [vmem:[#allocation8 + $0x30] sm:$0xf]
        %v527 = vld [vmem:[#allocation8 + $0x34] sm:$0xf]
        %v528 = vld [vmem:[#allocation8 + $0x38] sm:$0xf]
        %v529 = vld [vmem:[#allocation8 + $0x3c] sm:$0xf]
        %v530 = vld [vmem:[%s6] sm:$0x1]
        %v532 = vperm.slane %v530, 0
        %v550 = vunpack.c.l.b16 %v514
        %v551 = vunpack.c.l.b16 %v515
        %v552 = vunpack.c.l.b16 %v516
        %v553 = vunpack.c.l.b16 %v517
        %v554 = vunpack.c.l.b16 %v518
        %v555 = vunpack.c.l.b16 %v519
        %v556 = vunpack.c.l.b16 %v520
        %v557 = vunpack.c.l.b16 %v521
        %v558 = vunpack.c.l.b16 %v522
        %v559 = vunpack.c.l.b16 %v523
        %v560 = vunpack.c.l.b16 %v524
        %v561 = vunpack.c.l.b16 %v525
        %v562 = vunpack.c.l.b16 %v526
        %v563 = vunpack.c.l.b16 %v527
        %v564 = vunpack.c.l.b16 %v528
        %v565 = vunpack.c.l.b16 %v529
        %v566 = vpack.c.b16 %v551, %v550
        %v567 = vpack.c.b16 %v553, %v552
        %v568 = vpack.c.b16 %v555, %v554
        %v569 = vpack.c.b16 %v557, %v556
        %v570 = vpack.c.b16 %v559, %v558
        %v571 = vpack.c.b16 %v561, %v560
        %v572 = vpack.c.b16 %v563, %v562
        %v573 = vpack.c.b16 %v565, %v564
        %582 = vmatpush.bf16.msra.mxu0 %v573
        %583 = vmatpush.bf16.msra.mxu0 %v572
        %584 = vmatpush.bf16.msra.mxu0 %v571
        %585 = vmatpush.bf16.msra.mxu0 %v570
        %586 = vmatpush.bf16.msra.mxu0 %v569
        %587 = vmatpush.bf16.msra.mxu0 %v568
        %588 = vmatpush.bf16.msra.mxu0 %v567
        %589 = vmatpush.bf16.msra.mxu0 %v566
        %590 = vmatmul.bf16.gmra.mxu0 %v513
        %v591 = vpop.f32.mrf.mxu0
        %v592 = vadd.f32 %v532, %v591
        %v593 = vpop.f32.mrf.mxu0
        %594 = vdwg.mxu0
        %595 = vst [vmem:[%s345] sm:$0xff] %v592
        %s596 = sand.u32 %s186, 1
        %s597 = scalar_lea.sflag [#allocation4], %s596
        %s598 = sand.u32 %s186, 1
        %s599 = smul.addr %s598, 8
        %s600 = scalar_lea.vmem [#allocation10], %s599
        // Predicated region
        $region65: #{tpu_custom_call.1} parent=47 // pred_check
          %p601 = pneg %p196
        $region66: #{tpu_custom_call.1} parent=47 // pred_check_branch
          %603 = sbr.rel (%p601) target = $region68
        $region67: #{tpu_custom_call.1} parent=47 // pred_region
          %605 = vsyncadd %s597, 0
          %s606 = smul.addr %s26, 8
          %s607 = scalar_lea.hbm %s7, %s606
          %s609 = sshll.u32 %s600, 4
          %s610 = int_to_ptr.vmem [resolvable:$true] %s609
          %s611 = sshll.u32 %s607, 4
          %s612 = int_to_ptr.hbm [resolvable:$true] %s611
          %614 = dma.vmem_to_hbm [thread:$0]  %s610, 128, %s612, %s597
        $region68: #{tpu_custom_call.1} parent=47 // pred_fallthru
          _
      $region48: #{tpu_custom_call.1} parent=5 // pred_fallthru
        _
      %p615 = scmp.le.s32.totalorder 2, %s21
      // Predicated region
      $region69: #{tpu_custom_call.1} parent=5 // pred_check
        %p616 = pneg %p615
      $region70: #{tpu_custom_call.1} parent=5 // pred_check_branch
        %618 = sbr.rel (%p616) target = $region72
      $region71: #{tpu_custom_call.1} parent=5 // pred_region
        %s619 = ssub.s32 %s21, 2
        // Predicated region
        $region73: #{tpu_custom_call.1} parent=71 // pred_check
          %p620 = pneg %p202
        $region74: #{tpu_custom_call.1} parent=71 // pred_check_branch
          %622 = sbr.rel (%p620) target = $region76
        $region75: #{tpu_custom_call.1} parent=71 // pred_region
          %s623 = sand.u32 %s187, 1
          %s624 = scalar_lea.sflag [#allocation4], %s623
          %s625 = sand.u32 %s187, 1
          %s626 = smul.addr %s625, 8
          %s627 = scalar_lea.vmem [#allocation10], %s626
          %629 = dma.done %s624, 128
        $region76: #{tpu_custom_call.1} parent=71 // pred_fallthru
          _
      $region72: #{tpu_custom_call.1} parent=5 // pred_fallthru
        _
    $region6: #{tpu_custom_call.1} parent=1 // loop_footer
      %s25 = sadd.s32 1, %s21
    $region7: #{tpu_custom_call.1} parent=1 // loop_footer_branch
      %20 = sbr.rel target = $region3
    $region8: #{tpu_custom_call.1} parent=1 // loop_exit
      _
    %630 = vsyncpa [#allocation3], 1
    %s631 = scalar_lea.sflag [#allocation3], 1
    %632 = vsyncpa %s631, 1
    %633 = vsyncpa [#allocation6], 1
    %634 = vsyncpa [#allocation9], 1
    %635 = vsyncpa [#allocation4], 1
    %s636 = scalar_lea.sflag [#allocation4], 1
    %637 = vsyncpa %s636, 1

// kernel: tpu_custom_call.1
$region0: #{tpu_custom_call.1}
  #allocation0 [shape = 'u32[]', space=smem, size = 0x4, offset = 0x4, fixed_abs, tag = 'smem constant byte address 0x4 - core index']
  #allocation1 [shape = 'u32[72,128]{1,0:T(1,128)}', space=vmem, size = 0x9000, scoped, tag = 'internal scratch']
  %s0 = inlined_call_operand.hbm [shape: f32[16,128], index: 0, kind: input, shape index: {}]
  %s1 = inlined_call_operand.hbm [shape: bf16[128,128], index: 1, kind: input, shape index: {}]
  %s2 = inlined_call_operand.vmem [shape: f32[1,128], index: 2, kind: input, shape index: {}]
  %s3 = inlined_call_operand.hbm [shape: bf16[128,128], index: 3, kind: input, shape index: {}]
  %s4 = inlined_call_operand.vmem [shape: f32[1,128], index: 4, kind: input, shape index: {}]
  %s5 = inlined_call_operand.hbm [shape: bf16[128,128], index: 5, kind: input, shape index: {}]
  %s6 = inlined_call_operand.vmem [shape: f32[1,128], index: 6, kind: input, shape index: {}]
  %s7 = inlined_call_operand.hbm [shape: f32[16,128], index: 7, kind: output, shape index: {}]
  %s8 = sld [smem:[#allocation0]]
  $region77: #{tpu_custom_call.1} parent=0
    _
  %s10 = ssub.s32 1, %s8
  %s11 = scalar_select 0, %s10, %s8
  $region1: #{tpu_custom_call.1} parent=0
    #allocation2 [shape = 'u8[8192]{0}', space=vmem, size = 0x2000, scoped, tag = 'input window, operand 0']
    #allocation3 [shape = 's32[2]{0}', space=sflag, size = 0x8, scoped, tag = 'scoped memory for tpu_custom_call.1']
    #allocation4 [shape = 's32[2]{0}', space=sflag, size = 0x8, scoped, tag = 'scoped memory for tpu_custom_call.1']
    #allocation5 [shape = 'u8[32768]{0}', space=vmem, size = 0x8000, scoped, tag = 'input window, operand 1, single buffered']
    #allocation6 [shape = 's32[1]{0}', space=sflag, size = 0x4, scoped, tag = 'scoped memory for tpu_custom_call.1']
    #allocation7 [shape = 'u8[32768]{0}', space=vmem, size = 0x8000, scoped, tag = 'input window, operand 3, single buffered']
    #allocation8 [shape = 'u8[32768]{0}', space=vmem, size = 0x8000, scoped, tag = 'input window, operand 5, single buffered']
    #allocation9 [shape = 's32[1]{0}', space=sflag, size = 0x4, scoped, tag = 'scoped memory for tpu_custom_call.1']
    #allocation10 [shape = 'u8[8192]{0}', space=vmem, size = 0x2000, scoped, tag = 'output window, operand 0']
    %12 = vsyncpa [#allocation3], 0
    %s13 = scalar_lea.sflag [#allocation3], 1
    %14 = vsyncpa %s13, 0
    %15 = vsyncpa [#allocation6], 0
    %16 = vsyncpa [#allocation9], 0
    %17 = vsyncpa [#allocation4], 0
    %s18 = scalar_lea.sflag [#allocation4], 1
    %19 = vsyncpa %s18, 0
    loop: start=0, step=1, limit=4
    $region2: #{tpu_custom_call.1} parent=1 // loop_pre_header
      _
    $region3: #{tpu_custom_call.1} parent=1 // loop_header
      %s21 = sphi 0, %s25
      %p22 = scmp.ge.s32.totalorder %s21, 4
      %s31 = sphi 0, %s33
      %s34 = sphi 0, %s31
      %s35 = sphi 0, %s34
      %s51 = sphi 0, %s35
      %s55 = sphi 0, %s55
      %s57 = sphi 0, %s55
      %s58 = sphi 0, %s57
      %s72 = sphi 0, %s58
      %s76 = sphi 0, %s76
      %s78 = sphi 0, %s76
      %s79 = sphi 0, %s78
      %s93 = sphi 0, %s79
      %s97 = sphi 0, %s97
      %s99 = sphi 0, %s97
      %s100 = sphi 0, %s99
      %s114 = sphi 0, %s100
      %s118 = sphi 0, %s118
      %s120 = sphi 0, %s118
      %s121 = sphi 0, %s120
      %s135 = sphi 0, %s121
      %s139 = sphi 0, %s139
      %s141 = sphi 0, %s139
      %s142 = sphi 0, %s141
      %s156 = sphi 0, %s142
      %s160 = sphi 0, %s160
      %s162 = sphi 0, %s160
      %s163 = sphi 0, %s162
      %s177 = sphi 0, %s163
      %s183 = sphi 0, %s185
      %s186 = sphi 0, %s183
      %s187 = sphi 0, %s186
      %s203 = sphi 0, %s187
    $region4: #{tpu_custom_call.1} parent=1 // loop_header_branch
      %24 = sbr.rel (%p22) target = $region8
    $region5: #{tpu_custom_call.1} parent=1 // loop_body
      %s26 = ssub.s32 %s21, 1
      %s27 = ssub.s32 %s21, 2
      %s28 = sadd.s32 %s21, 1
      %s29 = ssub.s32 %s21, %s28
      %p30 = scmp.eq.s32.totalorder %s29, 0
      %s32 = sadd.s32 %s31, 1
      %s33 = scalar_select %p30, %s31, %s32
      %p36 = pneg %p30
      %p37 = scmp.eq.s32.totalorder %s21, 1
      %p38 = por %p36, %p37
      %p39 = scmp.ne.s32.totalorder %s31, %s34
      %p40 = scmp.eq.s32.totalorder %s21, 0
      %p41 = por %p39, %p40
      %p42 = scmp.ne.s32.totalorder %s31, %s34
      %p43 = scmp.eq.s32.totalorder %s26, 1
      %p44 = por %p42, %p43
      %p45 = scmp.ne.s32.totalorder %s34, %s35
      %p46 = scmp.eq.s32.totalorder %s26, 0
      %p47 = por %p45, %p46
      %p48 = scmp.ne.s32.totalorder %s34, %s35
      %p49 = scmp.eq.s32.totalorder %s27, 1
      %p50 = por %p48, %p49
      %p52 = scmp.ne.s32.totalorder %s35, %s51
      %p53 = scmp.eq.s32.totalorder %s27, 0
      %p54 = por %p52, %p53
      %s56 = sadd.s32 %s55, 1
      %p59 = scmp.eq.s32.totalorder %s21, 1
      %p60 = scmp.ne.s32.totalorder %s55, %s57
      %p61 = scmp.eq.s32.totalorder %s21, 0
      %p62 = por %p60, %p61
      %p63 = scmp.ne.s32.totalorder %s55, %s57
      %p64 = scmp.eq.s32.totalorder %s26, 1
      %p65 = por %p63, %p64
      %p66 = scmp.ne.s32.totalorder %s57, %s58
      %p67 = scmp.eq.s32.totalorder %s26, 0
      %p68 = por %p66, %p67
      %p69 = scmp.ne.s32.totalorder %s57, %s58
      %p70 = scmp.eq.s32.totalorder %s27, 1
      %p71 = por %p69, %p70
      %p73 = scmp.ne.s32.totalorder %s58, %s72
      %p74 = scmp.eq.s32.totalorder %s27, 0
      %p75 = por %p73, %p74
      %s77 = sadd.s32 %s76, 1
      %p80 = scmp.eq.s32.totalorder %s21, 1
      %p81 = scmp.ne.s32.totalorder %s76, %s78
      %p82 = scmp.eq.s32.totalorder %s21, 0
      %p83 = por %p81, %p82
      %p84 = scmp.ne.s32.totalorder %s76, %s78
      %p85 = scmp.eq.s32.totalorder %s26, 1
      %p86 = por %p84, %p85
      %p87 = scmp.ne.s32.totalorder %s78, %s79
      %p88 = scmp.eq.s32.totalorder %s26, 0
      %p89 = por %p87, %p88
      %p90 = scmp.ne.s32.totalorder %s78, %s79
      %p91 = scmp.eq.s32.totalorder %s27, 1
      %p92 = por %p90, %p91
      %p94 = scmp.ne.s32.totalorder %s79, %s93
      %p95 = scmp.eq.s32.totalorder %s27, 0
      %p96 = por %p94, %p95
      %s98 = sadd.s32 %s97, 1
      %p101 = scmp.eq.s32.totalorder %s21, 1
      %p102 = scmp.ne.s32.totalorder %s97, %s99
      %p103 = scmp.eq.s32.totalorder %s21, 0
      %p104 = por %p102, %p103
      %p105 = scmp.ne.s32.totalorder %s97, %s99
      %p106 = scmp.eq.s32.totalorder %s26, 1
      %p107 = por %p105, %p106
      %p108 = scmp.ne.s32.totalorder %s99, %s100
      %p109 = scmp.eq.s32.totalorder %s26, 0
      %p110 = por %p108, %p109
      %p111 = scmp.ne.s32.totalorder %s99, %s100
      %p112 = scmp.eq.s32.totalorder %s27, 1
      %p113 = por %p111, %p112
      %p115 = scmp.ne.s32.totalorder %s100, %s114
      %p116 = scmp.eq.s32.totalorder %s27, 0
      %p117 = por %p115, %p116
      %s119 = sadd.s32 %s118, 1
      %p122 = scmp.eq.s32.totalorder %s21, 1
      %p123 = scmp.ne.s32.totalorder %s118, %s120
      %p124 = scmp.eq.s32.totalorder %s21, 0
      %p125 = por %p123, %p124
      %p126 = scmp.ne.s32.totalorder %s118, %s120
      %p127 = scmp.eq.s32.totalorder %s26, 1
      %p128 = por %p126, %p127
      %p129 = scmp.ne.s32.totalorder %s120, %s121
      %p130 = scmp.eq.s32.totalorder %s26, 0
      %p131 = por %p129, %p130
      %p132 = scmp.ne.s32.totalorder %s120, %s121
      %p133 = scmp.eq.s32.totalorder %s27, 1
      %p134 = por %p132, %p133
      %p136 = scmp.ne.s32.totalorder %s121, %s135
      %p137 = scmp.eq.s32.totalorder %s27, 0
      %p138 = por %p136, %p137
      %s140 = sadd.s32 %s139, 1
      %p143 = scmp.eq.s32.totalorder %s21, 1
      %p144 = scmp.ne.s32.totalorder %s139, %s141
      %p145 = scmp.eq.s32.totalorder %s21, 0
      %p146 = por %p144, %p145
      %p147 = scmp.ne.s32.totalorder %s139, %s141
      %p148 = scmp.eq.s32.totalorder %s26, 1
      %p149 = por %p147, %p148
      %p150 = scmp.ne.s32.totalorder %s141, %s142
      %p151 = scmp.eq.s32.totalorder %s26, 0
      %p152 = por %p150, %p151
      %p153 = scmp.ne.s32.totalorder %s141, %s142
      %p154 = scmp.eq.s32.totalorder %s27, 1
      %p155 = por %p153, %p154
      %p157 = scmp.ne.s32.totalorder %s142, %s156
      %p158 = scmp.eq.s32.totalorder %s27, 0
      %p159 = por %p157, %p158
      %s161 = sadd.s32 %s160, 1
      %p164 = scmp.eq.s32.totalorder %s21, 1
      %p165 = scmp.ne.s32.totalorder %s160, %s162
      %p166 = scmp.eq.s32.totalorder %s21, 0
      %p167 = por %p165, %p166
      %p168 = scmp.ne.s32.totalorder %s160, %s162
      %p169 = scmp.eq.s32.totalorder %s26, 1
      %p170 = por %p168, %p169
      %p171 = scmp.ne.s32.totalorder %s162, %s163
      %p172 = scmp.eq.s32.totalorder %s26, 0
      %p173 = por %p171, %p172
      %p174 = scmp.ne.s32.totalorder %s162, %s163
      %p175 = scmp.eq.s32.totalorder %s27, 1
      %p176 = por %p174, %p175
      %p178 = scmp.ne.s32.totalorder %s163, %s177
      %p179 = scmp.eq.s32.totalorder %s27, 0
      %p180 = por %p178, %p179
      %s181 = ssub.s32 %s21, %s28
      %p182 = scmp.eq.s32.totalorder %s181, 0
      %s184 = sadd.s32 %s183, 1
      %s185 = scalar_select %p182, %s183, %s184
      %p188 = pneg %p182
      %p189 = scmp.eq.s32.totalorder %s21, 1
      %p190 = por %p188, %p189
      %p191 = scmp.ne.s32.totalorder %s183, %s186
      %p192 = scmp.eq.s32.totalorder %s21, 0
      %p193 = por %p191, %p192
      %p194 = scmp.ne.s32.totalorder %s183, %s186
      %p195 = scmp.eq.s32.totalorder %s26, 1
      %p196 = por %p194, %p195
      %p197 = scmp.ne.s32.totalorder %s186, %s187
      %p198 = scmp.eq.s32.totalorder %s26, 0
      %p199 = por %p197, %p198
      %p200 = scmp.ne.s32.totalorder %s186, %s187
      %p201 = scmp.eq.s32.totalorder %s27, 1
      %p202 = por %p200, %p201
      %p204 = scmp.ne.s32.totalorder %s187, %s203
      %p205 = scmp.eq.s32.totalorder %s27, 0
      %p206 = por %p204, %p205
      %p207 = scmp.le.s32.totalorder 1, %s21
      %p208 = scmp.lt.s32.totalorder %s21, 3
      %p209 = pnand %p207, %p208
      %p210 = pneg %p209
      // Predicated region
      $region9: #{tpu_custom_call.1} parent=5 // pred_check
        _
      $region10: #{tpu_custom_call.1} parent=5 // pred_check_branch
        %212 = sbr.rel (%p209) target = $region12
      $region11: #{tpu_custom_call.1} parent=5 // pred_region
        %s213 = ssub.s32 %s21, 1
        // Predicated region
        $region13: #{tpu_custom_call.1} parent=11 // pred_check
          %p214 = pneg %p68
        $region14: #{tpu_custom_call.1} parent=11 // pred_check_branch
          %216 = sbr.rel (%p214) target = $region16
        $region15: #{tpu_custom_call.1} parent=11 // pred_region
          %218 = vsyncadd [#allocation6], 0
          %s219 = sshll.u32 %s1, 4
          %s220 = int_to_ptr.hbm [resolvable:$true] %s219
          %s221 = sshll.u32 [#allocation5], 4
          %s222 = int_to_ptr.vmem [resolvable:$true] %s221
          %227 = dma.hbm_to_vmem [thread:$0]  %s220, 1024, %s222, [#allocation6], 64, 64, 4
        $region16: #{tpu_custom_call.1} parent=11 // pred_fallthru
          _
        // Predicated region
        $region17: #{tpu_custom_call.1} parent=11 // pred_check
          %p228 = pneg %p89
        $region18: #{tpu_custom_call.1} parent=11 // pred_check_branch
          %230 = sbr.rel (%p228) target = $region20
        $region19: #{tpu_custom_call.1} parent=11 // pred_region
          _
        $region20: #{tpu_custom_call.1} parent=11 // pred_fallthru
          _
        // Predicated region
        $region21: #{tpu_custom_call.1} parent=11 // pred_check
          %p231 = pneg %p110
        $region22: #{tpu_custom_call.1} parent=11 // pred_check_branch
          %233 = sbr.rel (%p231) target = $region24
        $region23: #{tpu_custom_call.1} parent=11 // pred_region
          %235 = vsyncadd [#allocation6], 0
          %s236 = sshll.u32 %s3, 4
          %s237 = int_to_ptr.hbm [resolvable:$true] %s236
          %s238 = sshll.u32 [#allocation7], 4
          %s239 = int_to_ptr.vmem [resolvable:$true] %s238
          %244 = dma.hbm_to_vmem [thread:$0]  %s237, 1024, %s239, [#allocation6], 64, 64, 4
        $region24: #{tpu_custom_call.1} parent=11 // pred_fallthru
          _
        // Predicated region
        $region25: #{tpu_custom_call.1} parent=11 // pred_check
          %p245 = pneg %p131
        $region26: #{tpu_custom_call.1} parent=11 // pred_check_branch
          %247 = sbr.rel (%p245) target = $region28
        $region27: #{tpu_custom_call.1} parent=11 // pred_region
          _
        $region28: #{tpu_custom_call.1} parent=11 // pred_fallthru
          _
        // Predicated region
        $region29: #{tpu_custom_call.1} parent=11 // pred_check
          %p248 = pneg %p152
        $region30: #{tpu_custom_call.1} parent=11 // pred_check_branch
          %250 = sbr.rel (%p248) target = $region32
        $region31: #{tpu_custom_call.1} parent=11 // pred_region
          %252 = vsyncadd [#allocation9], 0
          %s253 = sshll.u32 %s5, 4
          %s254 = int_to_ptr.hbm [resolvable:$true] %s253
          %s255 = sshll.u32 [#allocation8], 4
          %s256 = int_to_ptr.vmem [resolvable:$true] %s255
          %261 = dma.hbm_to_vmem [thread:$0]  %s254, 1024, %s256, [#allocation9], 64, 64, 4
        $region32: #{tpu_custom_call.1} parent=11 // pred_fallthru
          _
        // Predicated region
        $region33: #{tpu_custom_call.1} parent=11 // pred_check
          %p262 = pneg %p173
        $region34: #{tpu_custom_call.1} parent=11 // pred_check_branch
          %264 = sbr.rel (%p262) target = $region36
        $region35: #{tpu_custom_call.1} parent=11 // pred_region
          _
        $region36: #{tpu_custom_call.1} parent=11 // pred_fallthru
          _
      $region12: #{tpu_custom_call.1} parent=5 // pred_fallthru
        _
      %p265 = scmp.lt.s32.totalorder %s21, 2
      // Predicated region
      $region37: #{tpu_custom_call.1} parent=5 // pred_check
        %p266 = pneg %p265
      $region38: #{tpu_custom_call.1} parent=5 // pred_check_branch
        %268 = sbr.rel (%p266) target = $region40
      $region39: #{tpu_custom_call.1} parent=5 // pred_region
        // Predicated region
        $region41: #{tpu_custom_call.1} parent=39 // pred_check
          %p269 = pneg %p41
        $region42: #{tpu_custom_call.1} parent=39 // pred_check_branch
          %271 = sbr.rel (%p269) target = $region44
        $region43: #{tpu_custom_call.1} parent=39 // pred_region
          %s272 = sand.u32 %s31, 1
          %s273 = scalar_lea.sflag [#allocation3], %s272
          %s274 = sand.u32 %s31, 1
          %s275 = smul.addr %s274, 8
          %s276 = scalar_lea.vmem [#allocation2], %s275
          %278 = vsyncadd %s273, 0
          %s279 = smul.addr %s21, 8
          %s280 = scalar_lea.hbm %s0, %s279
          %s282 = sshll.u32 %s280, 4
          %s283 = int_to_ptr.hbm [resolvable:$true] %s282
          %s284 = sshll.u32 %s276, 4
          %s285 = int_to_ptr.vmem [resolvable:$true] %s284
          %287 = dma.hbm_to_vmem [thread:$0]  %s283, 128, %s285, %s273
        $region44: #{tpu_custom_call.1} parent=39 // pred_fallthru
          _
      $region40: #{tpu_custom_call.1} parent=5 // pred_fallthru
        _
      %p288 = scmp.le.s32.totalorder 1, %s21
      %p289 = scmp.lt.s32.totalorder %s21, 3
      %p290 = pnand %p288, %p289
      %p291 = pneg %p290
      // Predicated region
      $region45: #{tpu_custom_call.1} parent=5 // pred_check
        _
      $region46: #{tpu_custom_call.1} parent=5 // pred_check_branch
        %293 = sbr.rel (%p290) target = $region48
      $region47: #{tpu_custom_call.1} parent=5 // pred_region
        %s294 = ssub.s32 %s21, 1
        %s295 = sand.u32 %s34, 1
        %s296 = scalar_lea.sflag [#allocation3], %s295
        %s297 = sand.u32 %s34, 1
        %s298 = smul.addr %s297, 8
        %s299 = scalar_lea.vmem [#allocation2], %s298
        // Predicated region
        $region49: #{tpu_custom_call.1} parent=47 // pred_check
          %p300 = pneg %p47
        $region50: #{tpu_custom_call.1} parent=47 // pred_check_branch
          %302 = sbr.rel (%p300) target = $region52
        $region51: #{tpu_custom_call.1} parent=47 // pred_region
          %304 = dma.done %s296, 128
        $region52: #{tpu_custom_call.1} parent=47 // pred_fallthru
          _
        // Predicated region
        $region53: #{tpu_custom_call.1} parent=47 // pred_check
          %p305 = pneg %p68
        $region54: #{tpu_custom_call.1} parent=47 // pred_check_branch
          %307 = sbr.rel (%p305) target = $region56
        $region55: #{tpu_custom_call.1} parent=47 // pred_region
          %309 = dma.done [#allocation6], 1024
        $region56: #{tpu_custom_call.1} parent=47 // pred_fallthru
          _
        // Predicated region
        $region57: #{tpu_custom_call.1} parent=47 // pred_check
          %p310 = pneg %p110
        $region58: #{tpu_custom_call.1} parent=47 // pred_check_branch
          %312 = sbr.rel (%p310) target = $region60
        $region59: #{tpu_custom_call.1} parent=47 // pred_region
          %314 = dma.done [#allocation6], 1024
        $region60: #{tpu_custom_call.1} parent=47 // pred_fallthru
          _
        // Predicated region
        $region61: #{tpu_custom_call.1} parent=47 // pred_check
          %p315 = pneg %p152
        $region62: #{tpu_custom_call.1} parent=47 // pred_check_branch
          %317 = sbr.rel (%p315) target = $region64
        $region63: #{tpu_custom_call.1} parent=47 // pred_region
          %319 = dma.done [#allocation9], 1024
        $region64: #{tpu_custom_call.1} parent=47 // pred_fallthru
          _
        %s320 = sand.u32 %s34, 1
        %s321 = scalar_lea.sflag [#allocation3], %s320
        %s322 = sand.u32 %s34, 1
        %s323 = smul.addr %s322, 8
        %s324 = scalar_lea.vmem [#allocation2], %s323
        %p325 = pneg %p47
        %p326 = pneg %p44
        %p327 = pneg %p68
        %p328 = pneg %p65
        %p329 = pneg %p89
        %p330 = pneg %p86
        %p331 = pneg %p110
        %p332 = pneg %p107
        %p333 = pneg %p131
        %p334 = pneg %p128
        %p335 = pneg %p152
        %p336 = pneg %p149
        %p337 = pneg %p173
        %p338 = pneg %p170
        %p339 = pneg %p199
        %p340 = pneg %p196
        %s341 = sand.u32 %s186, 1
        %s342 = scalar_lea.sflag [#allocation4], %s341
        %s343 = sand.u32 %s186, 1
        %s344 = smul.addr %s343, 8
        %s345 = scalar_lea.vmem [#allocation10], %s344
        %v346 = vld [vmem:[%s299] sm:$0xff]
        %v347 = vpack.c.bf16 %v346, %v346
        %v348 = vld [vmem:[#allocation5] sm:$0xf]
        %v349 = vld [vmem:[#allocation5 + $0x4] sm:$0xf]
        %v350 = vld [vmem:[#allocation5 + $0x8] sm:$0xf]
        %v351 = vld [vmem:[#allocation5 + $0xc] sm:$0xf]
        %v352 = vld [vmem:[#allocation5 + $0x10] sm:$0xf]
        %v353 = vld [vmem:[#allocation5 + $0x14] sm:$0xf]
        %v354 = vld [vmem:[#allocation5 + $0x18] sm:$0xf]
        %v355 = vld [vmem:[#allocation5 + $0x1c] sm:$0xf]
        %v356 = vld [vmem:[#allocation5 + $0x20] sm:$0xf]
        %v357 = vld [vmem:[#allocation5 + $0x24] sm:$0xf]
        %v358 = vld [vmem:[#allocation5 + $0x28] sm:$0xf]
        %v359 = vld [vmem:[#allocation5 + $0x2c] sm:$0xf]
        %v360 = vld [vmem:[#allocation5 + $0x30] sm:$0xf]
        %v361 = vld [vmem:[#allocation5 + $0x34] sm:$0xf]
        %v362 = vld [vmem:[#allocation5 + $0x38] sm:$0xf]
        %v363 = vld [vmem:[#allocation5 + $0x3c] sm:$0xf]
        %v364 = vld [vmem:[%s2] sm:$0x1]
        %v366 = vperm.slane %v364, 0
        %v384 = vunpack.c.l.b16 %v348
        %v385 = vunpack.c.l.b16 %v349
        %v386 = vunpack.c.l.b16 %v350
        %v387 = vunpack.c.l.b16 %v351
        %v388 = vunpack.c.l.b16 %v352
        %v389 = vunpack.c.l.b16 %v353
        %v390 = vunpack.c.l.b16 %v354
        %v391 = vunpack.c.l.b16 %v355
        %v392 = vunpack.c.l.b16 %v356
        %v393 = vunpack.c.l.b16 %v357
        %v394 = vunpack.c.l.b16 %v358
        %v395 = vunpack.c.l.b16 %v359
        %v396 = vunpack.c.l.b16 %v360
        %v397 = vunpack.c.l.b16 %v361
        %v398 = vunpack.c.l.b16 %v362
        %v399 = vunpack.c.l.b16 %v363
        %v400 = vpack.c.b16 %v385, %v384
        %v401 = vpack.c.b16 %v387, %v386
        %v402 = vpack.c.b16 %v389, %v388
        %v403 = vpack.c.b16 %v391, %v390
        %v404 = vpack.c.b16 %v393, %v392
        %v405 = vpack.c.b16 %v395, %v394
        %v406 = vpack.c.b16 %v397, %v396
        %v407 = vpack.c.b16 %v399, %v398
        %416 = vmatpush.bf16.msra.mxu0 %v407
        %417 = vmatpush.bf16.msra.mxu0 %v406
        %418 = vmatpush.bf16.msra.mxu0 %v405
        %419 = vmatpush.bf16.msra.mxu0 %v404
        %420 = vmatpush.bf16.msra.mxu0 %v403
        %421 = vmatpush.bf16.msra.mxu0 %v402
        %422 = vmatpush.bf16.msra.mxu0 %v401
        %423 = vmatpush.bf16.msra.mxu0 %v400
        %424 = vmatmul.bf16.gmra.mxu0 %v347
        %v425 = vpop.f32.mrf.mxu0
        %v426 = vadd.f32 %v366, %v425
        %v427 = vpop.f32.mrf.mxu0
        %428 = vdwg.mxu0
        %v429 = vmax.f32 %v426, 0.0
        %v430 = vpack.c.bf16 %v429, %v429
        %v431 = vld [vmem:[#allocation7] sm:$0xf]
        %v432 = vld [vmem:[#allocation7 + $0x4] sm:$0xf]
        %v433 = vld [vmem:[#allocation7 + $0x8] sm:$0xf]
        %v434 = vld [vmem:[#allocation7 + $0xc] sm:$0xf]
        %v435 = vld [vmem:[#allocation7 + $0x10] sm:$0xf]
        %v436 = vld [vmem:[#allocation7 + $0x14] sm:$0xf]
        %v437 = vld [vmem:[#allocation7 + $0x18] sm:$0xf]
        %v438 = vld [vmem:[#allocation7 + $0x1c] sm:$0xf]
        %v439 = vld [vmem:[#allocation7 + $0x20] sm:$0xf]
        %v440 = vld [vmem:[#allocation7 + $0x24] sm:$0xf]
        %v441 = vld [vmem:[#allocation7 + $0x28] sm:$0xf]
        %v442 = vld [vmem:[#allocation7 + $0x2c] sm:$0xf]
        %v443 = vld [vmem:[#allocation7 + $0x30] sm:$0xf]
        %v444 = vld [vmem:[#allocation7 + $0x34] sm:$0xf]
        %v445 = vld [vmem:[#allocation7 + $0x38] sm:$0xf]
        %v446 = vld [vmem:[#allocation7 + $0x3c] sm:$0xf]
        %v447 = vld [vmem:[%s4] sm:$0x1]
        %v449 = vperm.slane %v447, 0
        %v467 = vunpack.c.l.b16 %v431
        %v468 = vunpack.c.l.b16 %v432
        %v469 = vunpack.c.l.b16 %v433
        %v470 = vunpack.c.l.b16 %v434
        %v471 = vunpack.c.l.b16 %v435
        %v472 = vunpack.c.l.b16 %v436
        %v473 = vunpack.c.l.b16 %v437
        %v474 = vunpack.c.l.b16 %v438
        %v475 = vunpack.c.l.b16 %v439
        %v476 = vunpack.c.l.b16 %v440
        %v477 = vunpack.c.l.b16 %v441
        %v478 = vunpack.c.l.b16 %v442
        %v479 = vunpack.c.l.b16 %v443
        %v480 = vunpack.c.l.b16 %v444
        %v481 = vunpack.c.l.b16 %v445
        %v482 = vunpack.c.l.b16 %v446
        %v483 = vpack.c.b16 %v468, %v467
        %v484 = vpack.c.b16 %v470, %v469
        %v485 = vpack.c.b16 %v472, %v471
        %v486 = vpack.c.b16 %v474, %v473
        %v487 = vpack.c.b16 %v476, %v475
        %v488 = vpack.c.b16 %v478, %v477
        %v489 = vpack.c.b16 %v480, %v479
        %v490 = vpack.c.b16 %v482, %v481
        %499 = vmatpush.bf16.msra.mxu0 %v490
        %500 = vmatpush.bf16.msra.mxu0 %v489
        %501 = vmatpush.bf16.msra.mxu0 %v488
        %502 = vmatpush.bf16.msra.mxu0 %v487
        %503 = vmatpush.bf16.msra.mxu0 %v486
        %504 = vmatpush.bf16.msra.mxu0 %v485
        %505 = vmatpush.bf16.msra.mxu0 %v484
        %506 = vmatpush.bf16.msra.mxu0 %v483
        %507 = vmatmul.bf16.gmra.mxu0 %v430
        %v508 = vpop.f32.mrf.mxu0
        %v509 = vadd.f32 %v449, %v508
        %v510 = vpop.f32.mrf.mxu0
        %511 = vdwg.mxu0
        %v512 = vmax.f32 %v509, 0.0
        %v513 = vpack.c.bf16 %v512, %v512
        %v514 = vld [vmem:[#allocation8] sm:$0xf]
        %v515 = vld [vmem:[#allocation8 + $0x4] sm:$0xf]
        %v516 = vld [vmem:[#allocation8 + $0x8] sm:$0xf]
        %v517 = vld [vmem:[#allocation8 + $0xc] sm:$0xf]
        %v518 = vld [vmem:[#allocation8 + $0x10] sm:$0xf]
        %v519 = vld [vmem:[#allocation8 + $0x14] sm:$0xf]
        %v520 = vld [vmem:[#allocation8 + $0x18] sm:$0xf]
        %v521 = vld [vmem:[#allocation8 + $0x1c] sm:$0xf]
        %v522 = vld [vmem:[#allocation8 + $0x20] sm:$0xf]
        %v523 = vld [vmem:[#allocation8 + $0x24] sm:$0xf]
        %v524 = vld [vmem:[#allocation8 + $0x28] sm:$0xf]
        %v525 = vld [vmem:[#allocation8 + $0x2c] sm:$0xf]
        %v526 = vld [vmem:[#allocation8 + $0x30] sm:$0xf]
        %v527 = vld [vmem:[#allocation8 + $0x34] sm:$0xf]
        %v528 = vld [vmem:[#allocation8 + $0x38] sm:$0xf]
        %v529 = vld [vmem:[#allocation8 + $0x3c] sm:$0xf]
        %v530 = vld [vmem:[%s6] sm:$0x1]
        %v532 = vperm.slane %v530, 0
        %v550 = vunpack.c.l.b16 %v514
        %v551 = vunpack.c.l.b16 %v515
        %v552 = vunpack.c.l.b16 %v516
        %v553 = vunpack.c.l.b16 %v517
        %v554 = vunpack.c.l.b16 %v518
        %v555 = vunpack.c.l.b16 %v519
        %v556 = vunpack.c.l.b16 %v520
        %v557 = vunpack.c.l.b16 %v521
        %v558 = vunpack.c.l.b16 %v522
        %v559 = vunpack.c.l.b16 %v523
        %v560 = vunpack.c.l.b16 %v524
        %v561 = vunpack.c.l.b16 %v525
        %v562 = vunpack.c.l.b16 %v526
        %v563 = vunpack.c.l.b16 %v527
        %v564 = vunpack.c.l.b16 %v528
        %v565 = vunpack.c.l.b16 %v529
        %v566 = vpack.c.b16 %v551, %v550
        %v567 = vpack.c.b16 %v553, %v552
        %v568 = vpack.c.b16 %v555, %v554
        %v569 = vpack.c.b16 %v557, %v556
        %v570 = vpack.c.b16 %v559, %v558
        %v571 = vpack.c.b16 %v561, %v560
        %v572 = vpack.c.b16 %v563, %v562
        %v573 = vpack.c.b16 %v565, %v564
        %582 = vmatpush.bf16.msra.mxu0 %v573
        %583 = vmatpush.bf16.msra.mxu0 %v572
        %584 = vmatpush.bf16.msra.mxu0 %v571
        %585 = vmatpush.bf16.msra.mxu0 %v570
        %586 = vmatpush.bf16.msra.mxu0 %v569
        %587 = vmatpush.bf16.msra.mxu0 %v568
        %588 = vmatpush.bf16.msra.mxu0 %v567
        %589 = vmatpush.bf16.msra.mxu0 %v566
        %590 = vmatmul.bf16.gmra.mxu0 %v513
        %v591 = vpop.f32.mrf.mxu0
        %v592 = vadd.f32 %v532, %v591
        %v593 = vpop.f32.mrf.mxu0
        %594 = vdwg.mxu0
        %595 = vst [vmem:[%s345] sm:$0xff] %v592
        %s596 = sand.u32 %s186, 1
        %s597 = scalar_lea.sflag [#allocation4], %s596
        %s598 = sand.u32 %s186, 1
        %s599 = smul.addr %s598, 8
        %s600 = scalar_lea.vmem [#allocation10], %s599
        // Predicated region
        $region65: #{tpu_custom_call.1} parent=47 // pred_check
          %p601 = pneg %p196
        $region66: #{tpu_custom_call.1} parent=47 // pred_check_branch
          %603 = sbr.rel (%p601) target = $region68
        $region67: #{tpu_custom_call.1} parent=47 // pred_region
          %605 = vsyncadd %s597, 0
          %s606 = smul.addr %s26, 8
          %s607 = scalar_lea.hbm %s7, %s606
          %s609 = sshll.u32 %s600, 4
          %s610 = int_to_ptr.vmem [resolvable:$true] %s609
          %s611 = sshll.u32 %s607, 4
          %s612 = int_to_ptr.hbm [resolvable:$true] %s611
          %614 = dma.vmem_to_hbm [thread:$0]  %s610, 128, %s612, %s597
        $region68: #{tpu_custom_call.1} parent=47 // pred_fallthru
          _
      $region48: #{tpu_custom_call.1} parent=5 // pred_fallthru
        _
      %p615 = scmp.le.s32.totalorder 2, %s21
      // Predicated region
      $region69: #{tpu_custom_call.1} parent=5 // pred_check
        %p616 = pneg %p615
      $region70: #{tpu_custom_call.1} parent=5 // pred_check_branch
        %618 = sbr.rel (%p616) target = $region72
      $region71: #{tpu_custom_call.1} parent=5 // pred_region
        %s619 = ssub.s32 %s21, 2
        // Predicated region
        $region73: #{tpu_custom_call.1} parent=71 // pred_check
          %p620 = pneg %p202
        $region74: #{tpu_custom_call.1} parent=71 // pred_check_branch
          %622 = sbr.rel (%p620) target = $region76
        $region75: #{tpu_custom_call.1} parent=71 // pred_region
          %s623 = sand.u32 %s187, 1
          %s624 = scalar_lea.sflag [#allocation4], %s623
          %s625 = sand.u32 %s187, 1
          %s626 = smul.addr %s625, 8
          %s627 = scalar_lea.vmem [#allocation10], %s626
          %629 = dma.done %s624, 128
        $region76: #{tpu_custom_call.1} parent=71 // pred_fallthru
          _
      $region72: #{tpu_custom_call.1} parent=5 // pred_fallthru
        _
    $region6: #{tpu_custom_call.1} parent=1 // loop_footer
      %s25 = sadd.s32 1, %s21
    $region7: #{tpu_custom_call.1} parent=1 // loop_footer_branch
      %20 = sbr.rel target = $region3
    $region8: #{tpu_custom_call.1} parent=1 // loop_exit
      _
    %630 = vsyncpa [#allocation3], 1
    %s631 = scalar_lea.sflag [#allocation3], 1
    %632 = vsyncpa %s631, 1
    %633 = vsyncpa [#allocation6], 1
    %634 = vsyncpa [#allocation9], 1
    %635 = vsyncpa [#allocation4], 1
    %s636 = scalar_lea.sflag [#allocation4], 1
    %637 = vsyncpa %s636, 1

</llo_original>
